<compile_context>
chip_gen: v7x
topology: tpu7x:2x2x1
jax: 0.10.0
libtpu: 0.0.40
codegen_flags: <defaults>
</compile_context>

<pallas_src>
import jax
import jax.numpy as jnp
from jax.experimental import pallas as pl
from jax.experimental.pallas import tpu as pltpu


LANE = 128      # TPU lane width: all output/activation channel dims pad to this
SUBLANE = 8     # sublane granularity for row counts / narrow K dims


def _round_up(x, m):
    return ((x + m - 1) // m) * m


def _pad_axis(a, target, axis):
    pad = target - a.shape[axis]
    if pad <= 0:
        return a
    widths = [(0, 0)] * a.ndim
    widths[axis] = (0, pad)
    return jnp.pad(a, widths)


def _pad2(a, rows, cols):
    return _pad_axis(_pad_axis(a.astype(jnp.float32), rows, 0), cols, 1)


# ----------------------------- Pallas kernels --------------------------------


def gine_conv_kernel(x_ref, src_oh_ref, tgtw_ref, ea_ref, mask_ref, eps_ref,
                     bw1_ref, bb1_ref, bw2_ref, bb2_ref,
                     mw1_ref, mb1_ref, mw2_ref, mb2_ref,
                     h_ref):
    """One grid step == one GINEConv + (folded) BatchNorm1d + ReLU layer.

    Node features are carried across layers in the resident output block
    `h_ref` (same block index every step -> no HBM round trip between layers).
    Gather / scatter-add are MXU matmuls against one-hot matrices; edge_weight
    is pre-folded into tgtw_ref columns by the wrapper.
    """
    f32 = jnp.float32

    @pl.when(pl.program_id(0) == 0)
    def _load_input():
        h_ref[...] = x_ref[...]

    h = h_ref[...]                                            # [N, C] features entering this layer

    # ---- bond encoder: Linear -> ReLU -> Linear (per-layer weights) --------
    emb = jnp.maximum(
        jnp.dot(ea_ref[...], bw1_ref[...], preferred_element_type=f32) + bb1_ref[...], 0.0)
    emb = jnp.dot(emb, bw2_ref[...], preferred_element_type=f32) + bb2_ref[...]   # [E, C]

    # ---- vectorized gather + message + weighted scatter-add (MXU) ----------
    x_src = jnp.dot(src_oh_ref[...], h, preferred_element_type=f32)   # [E, C] = h[src]
    msg = jnp.maximum(x_src + emb, 0.0)                               # relu(x_j + e)
    agg = jnp.dot(tgtw_ref[...], msg, preferred_element_type=f32)     # [N, C] weighted scatter-add

    # ---- (1 + eps) * x + aggr, node MLP, BatchNorm folded into mw2/mb2 ------
    node = (1.0 + eps_ref[...]) * h + agg
    node = jnp.maximum(
        jnp.dot(node, mw1_ref[...], preferred_element_type=f32) + mb1_ref[...], 0.0)
    node = jnp.dot(node, mw2_ref[...], preferred_element_type=f32) + mb2_ref[...]
    # mask keeps padded node rows exactly zero (bias+ReLU would otherwise leak)
    h_ref[...] = jnp.maximum(node, 0.0) * mask_ref[...]
    # TODO(synk): dropout (training mode) and BatchNorm batch statistics are
    # training-only behaviour; eval semantics (identity / running stats) used.


def readout_kernel(pool_ref, h_ref, w1_ref, b1_ref, w2_ref, b2_ref,
                   w3_ref, b3_ref, w4_ref, b4_ref, out_ref):
    """global_mean_pool (as a matmul against a normalized one-hot) + fc1..fc4."""
    f32 = jnp.float32
    g = jnp.dot(pool_ref[...], h_ref[...], preferred_element_type=f32)
    g = jnp.maximum(jnp.dot(g, w1_ref[...], preferred_element_type=f32) + b1_ref[...], 0.0)
    g = jnp.maximum(jnp.dot(g, w2_ref[...], preferred_element_type=f32) + b2_ref[...], 0.0)
    g = jnp.maximum(jnp.dot(g, w3_ref[...], preferred_element_type=f32) + b3_ref[...], 0.0)
    out_ref[...] = jnp.dot(g, w4_ref[...], preferred_element_type=f32) + b4_ref[...]


# ------------------------------- wrapper -------------------------------------


def net_gine_forward(x, edge_index, edge_attr, edge_weight, batch, num_graphs, params):
    n_nodes, in_dim = x.shape
    n_edges = edge_index.shape[1]
    n_layers = len(params["layers"])
    num_class = params["head"]["w4"].shape[1]

    # lane width for all activation / output channel dims
    dims = [in_dim, num_class]
    for p in params["layers"]:
        dims += [p["bw1"].shape[1], p["mw2"].shape[1]]
    C = _round_up(max(dims), LANE)
    Ce = _round_up(edge_attr.shape[1], SUBLANE)      # true K width for bond-encoder 1st matmul

    n_pad = _round_up(n_nodes, SUBLANE)
    e_pad = _round_up(n_edges, SUBLANE)
    g_pad = _round_up(num_graphs, SUBLANE)

    # --- node / edge tensors, channel-padded ---------------------------------
    x_p = _pad2(x, n_pad, C)
    ea_p = _pad2(edge_attr, e_pad, Ce)

    ew = edge_weight
    if ew.ndim < 2:
        ew = ew[:, None]
    ew = ew.astype(jnp.float32)                                   # [E, 1]

    src = edge_index[0].astype(jnp.int32)
    tgt = edge_index[1].astype(jnp.int32)
    # gather matrix: src_oh[e, n] = 1 iff src[e] == n (padded edge rows are zero)
    src_oh = _pad_axis(jax.nn.one_hot(src, n_pad, dtype=jnp.float32), e_pad, 0)   # [E_pad, N_pad]
    # scatter matrix with edge_weight folded in: tgtw[n, e] = ew[e] iff tgt[e] == n
    tgtw_T = _pad_axis((jax.nn.one_hot(tgt, n_pad, dtype=jnp.float32) * ew).T,
                       e_pad, 1)                                                  # [N_pad, E_pad]

    node_mask = jnp.zeros((n_pad, 1), jnp.float32).at[:n_nodes, :].set(1.0)

    # --- stack per-layer weights, pad channels, fold BatchNorm ---------------
    bw1_l, bb1_l, bw2_l, bb2_l = [], [], [], []
    mw1_l, mb1_l, mw2_l, mb2_l, eps_l = [], [], [], [], []
    for p in params["layers"]:
        scale = p["bng"] / jnp.sqrt(p["bnv"] + 1e-5)                 # [1, dim2]
        mw2f = p["mw2"] * scale                                      # BN scale into weight
        mb2f = (p["mb2"] - p["bnm"]) * scale + p["bnb"]              # BN shift into bias
        bw1_l.append(_pad2(p["bw1"], Ce, C)); bb1_l.append(_pad2(p["bb1"], 1, C))
        bw2_l.append(_pad2(p["bw2"], C, C));  bb2_l.append(_pad2(p["bb2"], 1, C))
        mw1_l.append(_pad2(p["mw1"], C, C));  mb1_l.append(_pad2(p["mb1"], 1, C))
        mw2_l.append(_pad2(mw2f, C, C));      mb2_l.append(_pad2(mb2f, 1, C))
        eps_l.append(jnp.full((1, C), p["eps"][0], jnp.float32))
    bw1_s, bb1_s = jnp.stack(bw1_l), jnp.stack(bb1_l)
    bw2_s, bb2_s = jnp.stack(bw2_l), jnp.stack(bb2_l)
    mw1_s, mb1_s = jnp.stack(mw1_l), jnp.stack(mb1_l)
    mw2_s, mb2_s = jnp.stack(mw2_l), jnp.stack(mb2_l)
    eps_s = jnp.stack(eps_l)                                         # [L, 1, C]

    # --- conv layers: grid over layers, graph tensors resident, weights streamed
    def fixed(l):
        return (0, 0)

    def per_layer(l):
        return (l, 0, 0)

    wspec = pl.BlockSpec((None, C, C), per_layer)
    bspec = pl.BlockSpec((None, 1, C), per_layer)

    in_specs = [
        pl.BlockSpec((n_pad, C), fixed),          # x
        pl.BlockSpec((e_pad, n_pad), fixed),      # src one-hot (gather)
        pl.BlockSpec((n_pad, e_pad), fixed),      # tgt one-hot^T * edge_weight (scatter-add)
        pl.BlockSpec((e_pad, Ce), fixed),         # edge_attr (true K width)
        pl.BlockSpec((n_pad, 1), fixed),          # node mask
        bspec,                                    # eps
        pl.BlockSpec((None, Ce, C), per_layer), bspec,   # bond encoder 1
        wspec, bspec,                                     # bond encoder 2
        wspec, bspec, wspec, bspec,                       # node MLP (BN folded)
    ]

    grid_spec = pltpu.PrefetchScalarGridSpec(
        num_scalar_prefetch=0,
        grid=(n_layers,),
        in_specs=in_specs,
        out_specs=pl.BlockSpec((n_pad, C), fixed),   # resident carry across layers
    )

    h_final = pl.pallas_call(
        gine_conv_kernel,
        grid_spec=grid_spec,
        out_shape=jax.ShapeDtypeStruct((n_pad, C), jnp.float32),
        compiler_params=pltpu.CompilerParams(
            dimension_semantics=("arbitrary",),      # layers are sequentially dependent
        ),
    )(x_p, src_oh, tgtw_T, ea_p, node_mask, eps_s,
      bw1_s, bb1_s, bw2_s, bb2_s, mw1_s, mb1_s, mw2_s, mb2_s)

    # --- readout head as a tiny second pallas_call (not resident during convs)
    onehot_b = jax.nn.one_hot(batch, num_graphs, dtype=jnp.float32).T      # [G, N]
    counts = jnp.sum(onehot_b, axis=1, keepdims=True)
    pool_p = _pad2(onehot_b / jnp.maximum(counts, 1.0), g_pad, n_pad)      # [G_pad, N_pad]

    hp = params["head"]
    w1, b1 = _pad2(hp["w1"], C, C), _pad2(hp["b1"], 1, C)
    w2, b2 = _pad2(hp["w2"], C, C), _pad2(hp["b2"], 1, C)
    w3, b3 = _pad2(hp["w3"], C, C), _pad2(hp["b3"], 1, C)
    w4, b4 = _pad2(hp["w4"], C, C), _pad2(hp["b4"], 1, C)

    def fix2(i):
        return (0, 0)

    head_specs = [
        pl.BlockSpec((g_pad, n_pad), fix2),
        pl.BlockSpec((n_pad, C), fix2),
        pl.BlockSpec((C, C), fix2), pl.BlockSpec((1, C), fix2),
        pl.BlockSpec((C, C), fix2), pl.BlockSpec((1, C), fix2),
        pl.BlockSpec((C, C), fix2), pl.BlockSpec((1, C), fix2),
        pl.BlockSpec((C, C), fix2), pl.BlockSpec((1, C), fix2),
    ]

    out = pl.pallas_call(
        readout_kernel,
        grid_spec=pltpu.PrefetchScalarGridSpec(
            num_scalar_prefetch=0,
            grid=(1,),
            in_specs=head_specs,
            out_specs=pl.BlockSpec((g_pad, C), fix2),
        ),
        out_shape=jax.ShapeDtypeStruct((g_pad, C), jnp.float32),
        compiler_params=pltpu.CompilerParams(dimension_semantics=("arbitrary",)),
    )(pool_p, h_final, w1, b1, w2, b2, w3, b3, w4, b4)

    return out[:num_graphs, :num_class]


# --------------------------- parameter creation ------------------------------


def _linear(key, in_dim, out_dim):
    k1, k2 = jax.random.split(key)
    bound = 1.0 / jnp.sqrt(jnp.float32(in_dim))
    w = jax.random.uniform(k1, (in_dim, out_dim), jnp.float32, -bound, bound)
    b = jax.random.uniform(k2, (1, out_dim), jnp.float32, -bound, bound)
    return w, b


def make_params(key, input_dims, edge_features, dim, num_convlayers, num_class):
    layers = []
    for i in range(num_convlayers):
        dim1 = input_dims if i == 0 else dim
        dim2 = dim
        keys = jax.random.split(jax.random.fold_in(key, i), 7)
        bw1, bb1 = _linear(keys[0], edge_features, dim1)
        bw2, bb2 = _linear(keys[1], dim1, dim1)
        mw1, mb1 = _linear(keys[2], dim1, dim1)
        mw2, mb2 = _linear(keys[3], dim1, dim2)
        bnm = 0.1 * jax.random.normal(keys[4], (1, dim2), jnp.float32)
        bnv = 0.5 + jnp.abs(jax.random.normal(keys[5], (1, dim2), jnp.float32))
        eps = 0.05 * jax.random.normal(keys[6], (1,), jnp.float32)
        layers.append(dict(
            eps=eps,
            bw1=bw1, bb1=bb1, bw2=bw2, bb2=bb2,
            mw1=mw1, mb1=mb1, mw2=mw2, mb2=mb2,
            bng=jnp.ones((1, dim2), jnp.float32),
            bnb=jnp.zeros((1, dim2), jnp.float32),
            bnm=bnm, bnv=bnv,
        ))
    hkeys = jax.random.split(jax.random.fold_in(key, 1000), 4)
    w1, b1 = _linear(hkeys[0], dim, dim)     # jk=None -> fc1: dim -> dim
    w2, b2 = _linear(hkeys[1], dim, dim)
    w3, b3 = _linear(hkeys[2], dim, dim)
    w4, b4 = _linear(hkeys[3], dim, num_class)
    head_p = dict(w1=w1, b1=b1, w2=w2, b2=b2, w3=w3, b3=b3, w4=w4, b4=b4)
    return dict(layers=layers, head=head_p)


# ------------------------------ reference ------------------------------------


def ref_forward(x, edge_index, edge_attr, edge_weight, batch, num_graphs, params):
    src, tgt = edge_index[0], edge_index[1]
    ew = edge_weight[:, None] if edge_weight.ndim < 2 else edge_weight
    h = x
    for p in params["layers"]:
        e = jnp.maximum(edge_attr @ p["bw1"] + p["bb1"], 0.0) @ p["bw2"] + p["bb2"]
        m = jnp.maximum(h[src] + e, 0.0) * ew
        agg = jnp.zeros_like(h).at[tgt].add(m)
        out = (1.0 + p["eps"][0]) * h + agg
        out = jnp.maximum(out @ p["mw1"] + p["mb1"], 0.0) @ p["mw2"] + p["mb2"]
        out = (out - p["bnm"]) / jnp.sqrt(p["bnv"] + 1e-5) * p["bng"] + p["bnb"]
        h = jnp.maximum(out, 0.0)
    oh = jax.nn.one_hot(batch, num_graphs, dtype=jnp.float32).T
    g = (oh @ h) / jnp.maximum(jnp.sum(oh, axis=1, keepdims=True), 1.0)
    hp = params["head"]
    g = jnp.maximum(g @ hp["w1"] + hp["b1"], 0.0)
    g = jnp.maximum(g @ hp["w2"] + hp["b2"], 0.0)
    g = jnp.maximum(g @ hp["w3"] + hp["b3"], 0.0)
    return g @ hp["w4"] + hp["b4"]


# --------------------------------- main ---------------------------------------

if __name__ == "__main__":
    key = jax.random.PRNGKey(0)

    N, E = 16, 32                 # nodes, edges
    input_dims = 32               # node feature dim
    edge_features = 16            # edge feature dim
    dim = 32                      # hidden dim
    num_convlayers = 3
    num_class = 1
    num_graphs = 2

    k_x, k_ea, k_ew, k_src, k_tgt, k_p = jax.random.split(key, 6)
    x = jax.random.normal(k_x, (N, input_dims), jnp.float32)
    edge_attr = jax.random.normal(k_ea, (E, edge_features), jnp.float32)
    edge_weight = jax.random.uniform(k_ew, (E,), jnp.float32, 0.1, 1.0)
    # half the nodes in graph 0, half in graph 1; edges stay within a graph
    src0 = jax.random.randint(k_src, (E // 2,), 0, N // 2)
    tgt0 = jax.random.randint(k_tgt, (E // 2,), 0, N // 2)
    src1 = jax.random.randint(jax.random.fold_in(k_src, 1), (E // 2,), N // 2, N)
    tgt1 = jax.random.randint(jax.random.fold_in(k_tgt, 1), (E // 2,), N // 2, N)
    edge_index = jnp.stack([jnp.concatenate([src0, src1]),
                            jnp.concatenate([tgt0, tgt1])], axis=0)
    batch = jnp.concatenate([jnp.zeros((N // 2,), jnp.int32),
                             jnp.ones((N // 2,), jnp.int32)])

    params = make_params(k_p, input_dims, edge_features, dim, num_convlayers, num_class)

    out = net_gine_forward(x, edge_index, edge_attr, edge_weight, batch, num_graphs, params)
    out = jax.block_until_ready(out)

    ref = jax.block_until_ready(
        ref_forward(x, edge_index, edge_attr, edge_weight, batch, num_graphs, params))

    assert out.shape == (num_graphs, num_class), out.shape
    assert jnp.allclose(out, ref, rtol=1e-3, atol=1e-3), (out, ref)
    print("KERNEL_OK")
</pallas_src>

<mosaic_0001>
module attributes {stable_mosaic.version = 11 : i64} {
  func.func @gine_conv_kernel(%arg0: i32, %arg1: memref<16x128xf32, #tpu.memory_space<vmem>>, %arg2: memref<32x16xf32, #tpu.memory_space<vmem>>, %arg3: memref<16x32xf32, #tpu.memory_space<vmem>>, %arg4: memref<32x16xf32, #tpu.memory_space<vmem>>, %arg5: memref<16x1xf32, #tpu.memory_space<vmem>>, %arg6: memref<1x1x128xf32, #tpu.memory_space<vmem>>, %arg7: memref<1x16x128xf32, #tpu.memory_space<vmem>>, %arg8: memref<1x1x128xf32, #tpu.memory_space<vmem>>, %arg9: memref<1x128x128xf32, #tpu.memory_space<vmem>>, %arg10: memref<1x1x128xf32, #tpu.memory_space<vmem>>, %arg11: memref<1x128x128xf32, #tpu.memory_space<vmem>>, %arg12: memref<1x1x128xf32, #tpu.memory_space<vmem>>, %arg13: memref<1x128x128xf32, #tpu.memory_space<vmem>>, %arg14: memref<1x1x128xf32, #tpu.memory_space<vmem>>, %arg15: memref<16x128xf32, #tpu.memory_space<vmem>>) attributes {dimension_semantics = [#tpu.dimension_semantics<arbitrary>], iteration_bounds = array<i64: 3>, scalar_prefetch = 0 : i64, scratch_operands = 0 : i64, tpu.core_type = #tpu.core_type<tc>, window_params = [{pipeline_mode = #tpu.pipeline_mode<synchronous>, transform_indices = @transform_0, window_bounds = array<i64: 16, 128>}, {pipeline_mode = #tpu.pipeline_mode<synchronous>, transform_indices = @transform_1, window_bounds = array<i64: 32, 16>}, {pipeline_mode = #tpu.pipeline_mode<synchronous>, transform_indices = @transform_2, window_bounds = array<i64: 16, 32>}, {pipeline_mode = #tpu.pipeline_mode<synchronous>, transform_indices = @transform_3, window_bounds = array<i64: 32, 16>}, {pipeline_mode = #tpu.pipeline_mode<synchronous>, transform_indices = @transform_4, window_bounds = array<i64: 16, 1>}, {transform_indices = @transform_5, window_bounds = array<i64: 1, 1, 128>}, {transform_indices = @transform_6, window_bounds = array<i64: 1, 16, 128>}, {transform_indices = @transform_7, window_bounds = array<i64: 1, 1, 128>}, {transform_indices = @transform_8, window_bounds = array<i64: 1, 128, 128>}, {transform_indices = @transform_9, window_bounds = array<i64: 1, 1, 128>}, {transform_indices = @transform_10, window_bounds = array<i64: 1, 128, 128>}, {transform_indices = @transform_11, window_bounds = array<i64: 1, 1, 128>}, {transform_indices = @transform_12, window_bounds = array<i64: 1, 128, 128>}, {transform_indices = @transform_13, window_bounds = array<i64: 1, 1, 128>}, {pipeline_mode = #tpu.pipeline_mode<synchronous>, transform_indices = @transform_14, window_bounds = array<i64: 16, 128>}]} {
    %c0_i32 = arith.constant 0 : i32
    %0 = arith.cmpi eq, %arg0, %c0_i32 : i32
    %1 = arith.extui %0 : i1 to i32
    %c0_i32_0 = arith.constant 0 : i32
    %2 = arith.cmpi ne, %1, %c0_i32_0 : i32
    scf.if %2 {
      %c0_49 = arith.constant 0 : index
      %c0_50 = arith.constant 0 : index
      %57 = vector.load %arg1[%c0_49, %c0_50] : memref<16x128xf32, #tpu.memory_space<vmem>>, vector<16x128xf32>
      %c0_51 = arith.constant 0 : index
      %c0_52 = arith.constant 0 : index
      %58 = vector.load %arg15[%c0_51, %c0_52] : memref<16x128xf32, #tpu.memory_space<vmem>>, vector<16x128xf32>
      tpu.vector_store %arg15[%c0_51, %c0_52], %57 {strides = array<i32>} : memref<16x128xf32, #tpu.memory_space<vmem>>, vector<16x128xf32>,
    } else {
    }
    %c0 = arith.constant 0 : index
    %c0_1 = arith.constant 0 : index
    %3 = vector.load %arg15[%c0, %c0_1] : memref<16x128xf32, #tpu.memory_space<vmem>>, vector<16x128xf32>
    %c0_2 = arith.constant 0 : index
    %c0_3 = arith.constant 0 : index
    %4 = vector.load %arg4[%c0_2, %c0_3] : memref<32x16xf32, #tpu.memory_space<vmem>>, vector<32x16xf32>
    %c0_4 = arith.constant 0 : index
    %c0_5 = arith.constant 0 : index
    %c0_6 = arith.constant 0 : index
    %5 = vector.load %arg7[%c0_4, %c0_5, %c0_6] : memref<1x16x128xf32, #tpu.memory_space<vmem>>, vector<1x16x128xf32>
    %6 = vector.shape_cast %5 : vector<1x16x128xf32> to vector<16x128xf32>
    %cst = arith.constant dense<0.000000e+00> : vector<32x128xf32>
    %7 = tpu.matmul %4, %6, %cst {dimension_numbers = #tpu.dot_dimension_numbers<[1], [0], [0], [1], [0, 0, 1, 1], [], []>} : vector<32x16xf32>, vector<16x128xf32>, vector<32x128xf32> -> vector<32x128xf32>
    %c0_7 = arith.constant 0 : index
    %c0_8 = arith.constant 0 : index
    %c0_9 = arith.constant 0 : index
    %8 = vector.load %arg8[%c0_7, %c0_8, %c0_9] : memref<1x1x128xf32, #tpu.memory_space<vmem>>, vector<1x1x128xf32>
    %9 = vector.shape_cast %8 : vector<1x1x128xf32> to vector<1x128xf32>
    %10 = vector.broadcast %9 : vector<1x128xf32> to vector<32x128xf32>
    %11 = arith.addf %7, %10 : vector<32x128xf32>
    %cst_10 = arith.constant 0.000000e+00 : f32
    %12 = vector.broadcast %cst_10 : f32 to vector<32x128xf32>
    %13 = arith.maximumf %11, %12 : vector<32x128xf32>
    %c0_11 = arith.constant 0 : index
    %c0_12 = arith.constant 0 : index
    %c0_13 = arith.constant 0 : index
    %14 = vector.load %arg9[%c0_11, %c0_12, %c0_13] : memref<1x128x128xf32, #tpu.memory_space<vmem>>, vector<1x128x128xf32>
    %15 = vector.shape_cast %14 : vector<1x128x128xf32> to vector<128x128xf32>
    %cst_14 = arith.constant dense<0.000000e+00> : vector<32x128xf32>
    %16 = tpu.matmul %13, %15, %cst_14 {dimension_numbers = #tpu.dot_dimension_numbers<[1], [0], [0], [1], [0, 0, 1, 1], [], []>} : vector<32x128xf32>, vector<128x128xf32>, vector<32x128xf32> -> vector<32x128xf32>
    %c0_15 = arith.constant 0 : index
    %c0_16 = arith.constant 0 : index
    %c0_17 = arith.constant 0 : index
    %17 = vector.load %arg10[%c0_15, %c0_16, %c0_17] : memref<1x1x128xf32, #tpu.memory_space<vmem>>, vector<1x1x128xf32>
    %18 = vector.shape_cast %17 : vector<1x1x128xf32> to vector<1x128xf32>
    %19 = vector.broadcast %18 : vector<1x128xf32> to vector<32x128xf32>
    %20 = arith.addf %16, %19 : vector<32x128xf32>
    %c0_18 = arith.constant 0 : index
    %c0_19 = arith.constant 0 : index
    %21 = vector.load %arg2[%c0_18, %c0_19] : memref<32x16xf32, #tpu.memory_space<vmem>>, vector<32x16xf32>
    %cst_20 = arith.constant dense<0.000000e+00> : vector<32x128xf32>
    %22 = tpu.matmul %21, %3, %cst_20 {dimension_numbers = #tpu.dot_dimension_numbers<[1], [0], [0], [1], [0, 0, 1, 1], [], []>} : vector<32x16xf32>, vector<16x128xf32>, vector<32x128xf32> -> vector<32x128xf32>
    %23 = arith.addf %22, %20 : vector<32x128xf32>
    %cst_21 = arith.constant 0.000000e+00 : f32
    %24 = vector.broadcast %cst_21 : f32 to vector<32x128xf32>
    %25 = arith.maximumf %23, %24 : vector<32x128xf32>
    %c0_22 = arith.constant 0 : index
    %c0_23 = arith.constant 0 : index
    %26 = vector.load %arg3[%c0_22, %c0_23] : memref<16x32xf32, #tpu.memory_space<vmem>>, vector<16x32xf32>
    %cst_24 = arith.constant dense<0.000000e+00> : vector<16x128xf32>
    %27 = tpu.matmul %26, %25, %cst_24 {dimension_numbers = #tpu.dot_dimension_numbers<[1], [0], [0], [1], [0, 0, 1, 1], [], []>} : vector<16x32xf32>, vector<32x128xf32>, vector<16x128xf32> -> vector<16x128xf32>
    %c0_25 = arith.constant 0 : index
    %c0_26 = arith.constant 0 : index
    %c0_27 = arith.constant 0 : index
    %28 = vector.load %arg6[%c0_25, %c0_26, %c0_27] : memref<1x1x128xf32, #tpu.memory_space<vmem>>, vector<1x1x128xf32>
    %29 = vector.shape_cast %28 : vector<1x1x128xf32> to vector<1x128xf32>
    %cst_28 = arith.constant 1.000000e+00 : f32
    %30 = vector.broadcast %cst_28 : f32 to vector<1x128xf32>
    %31 = arith.addf %30, %29 : vector<1x128xf32>
    %32 = vector.broadcast %31 : vector<1x128xf32> to vector<16x128xf32>
    %33 = arith.mulf %32, %3 : vector<16x128xf32>
    %34 = arith.addf %33, %27 : vector<16x128xf32>
    %c0_29 = arith.constant 0 : index
    %c0_30 = arith.constant 0 : index
    %c0_31 = arith.constant 0 : index
    %35 = vector.load %arg11[%c0_29, %c0_30, %c0_31] : memref<1x128x128xf32, #tpu.memory_space<vmem>>, vector<1x128x128xf32>
    %36 = vector.shape_cast %35 : vector<1x128x128xf32> to vector<128x128xf32>
    %cst_32 = arith.constant dense<0.000000e+00> : vector<16x128xf32>
    %37 = tpu.matmul %34, %36, %cst_32 {dimension_numbers = #tpu.dot_dimension_numbers<[1], [0], [0], [1], [0, 0, 1, 1], [], []>} : vector<16x128xf32>, vector<128x128xf32>, vector<16x128xf32> -> vector<16x128xf32>
    %c0_33 = arith.constant 0 : index
    %c0_34 = arith.constant 0 : index
    %c0_35 = arith.constant 0 : index
    %38 = vector.load %arg12[%c0_33, %c0_34, %c0_35] : memref<1x1x128xf32, #tpu.memory_space<vmem>>, vector<1x1x128xf32>
    %39 = vector.shape_cast %38 : vector<1x1x128xf32> to vector<1x128xf32>
    %40 = vector.broadcast %39 : vector<1x128xf32> to vector<16x128xf32>
    %41 = arith.addf %37, %40 : vector<16x128xf32>
    %cst_36 = arith.constant 0.000000e+00 : f32
    %42 = vector.broadcast %cst_36 : f32 to vector<16x128xf32>
    %43 = arith.maximumf %41, %42 : vector<16x128xf32>
    %c0_37 = arith.constant 0 : index
    %c0_38 = arith.constant 0 : index
    %c0_39 = arith.constant 0 : index
    %44 = vector.load %arg13[%c0_37, %c0_38, %c0_39] : memref<1x128x128xf32, #tpu.memory_space<vmem>>, vector<1x128x128xf32>
    %45 = vector.shape_cast %44 : vector<1x128x128xf32> to vector<128x128xf32>
    %cst_40 = arith.constant dense<0.000000e+00> : vector<16x128xf32>
    %46 = tpu.matmul %43, %45, %cst_40 {dimension_numbers = #tpu.dot_dimension_numbers<[1], [0], [0], [1], [0, 0, 1, 1], [], []>} : vector<16x128xf32>, vector<128x128xf32>, vector<16x128xf32> -> vector<16x128xf32>
    %c0_41 = arith.constant 0 : index
    %c0_42 = arith.constant 0 : index
    %c0_43 = arith.constant 0 : index
    %47 = vector.load %arg14[%c0_41, %c0_42, %c0_43] : memref<1x1x128xf32, #tpu.memory_space<vmem>>, vector<1x1x128xf32>
    %48 = vector.shape_cast %47 : vector<1x1x128xf32> to vector<1x128xf32>
    %49 = vector.broadcast %48 : vector<1x128xf32> to vector<16x128xf32>
    %50 = arith.addf %46, %49 : vector<16x128xf32>
    %cst_44 = arith.constant 0.000000e+00 : f32
    %51 = vector.broadcast %cst_44 : f32 to vector<16x128xf32>
    %52 = arith.maximumf %50, %51 : vector<16x128xf32>
    %c0_45 = arith.constant 0 : index
    %c0_46 = arith.constant 0 : index
    %53 = vector.load %arg5[%c0_45, %c0_46] : memref<16x1xf32, #tpu.memory_space<vmem>>, vector<16x1xf32>
    %54 = vector.broadcast %53 : vector<16x1xf32> to vector<16x128xf32>
    %55 = arith.mulf %52, %54 : vector<16x128xf32>
    %c0_47 = arith.constant 0 : index
    %c0_48 = arith.constant 0 : index
    %56 = vector.load %arg15[%c0_47, %c0_48] : memref<16x128xf32, #tpu.memory_space<vmem>>, vector<16x128xf32>
    tpu.vector_store %arg15[%c0_47, %c0_48], %55 {strides = array<i32>} : memref<16x128xf32, #tpu.memory_space<vmem>>, vector<16x128xf32>,
    return
  }
  func.func @transform_0(%arg0: i32) -> (i32, i32) {
    %c0_i32 = arith.constant 0 : i32
    %c0_i32_0 = arith.constant 0 : i32
    %c0_i32_1 = arith.constant 0 : i32
    return %c0_i32, %c0_i32_0 : i32, i32
  }
  func.func @transform_1(%arg0: i32) -> (i32, i32) {
    %c0_i32 = arith.constant 0 : i32
    %c0_i32_0 = arith.constant 0 : i32
    %c0_i32_1 = arith.constant 0 : i32
    return %c0_i32, %c0_i32_0 : i32, i32
  }
  func.func @transform_2(%arg0: i32) -> (i32, i32) {
    %c0_i32 = arith.constant 0 : i32
    %c0_i32_0 = arith.constant 0 : i32
    %c0_i32_1 = arith.constant 0 : i32
    return %c0_i32, %c0_i32_0 : i32, i32
  }
  func.func @transform_3(%arg0: i32) -> (i32, i32) {
    %c0_i32 = arith.constant 0 : i32
    %c0_i32_0 = arith.constant 0 : i32
    %c0_i32_1 = arith.constant 0 : i32
    return %c0_i32, %c0_i32_0 : i32, i32
  }
  func.func @transform_4(%arg0: i32) -> (i32, i32) {
    %c0_i32 = arith.constant 0 : i32
    %c0_i32_0 = arith.constant 0 : i32
    %c0_i32_1 = arith.constant 0 : i32
    return %c0_i32, %c0_i32_0 : i32, i32
  }
  func.func @transform_5(%arg0: i32) -> (i32, i32, i32) {
    %c0_i32 = arith.constant 0 : i32
    %c0_i32_0 = arith.constant 0 : i32
    %c0_i32_1 = arith.constant 0 : i32
    return %arg0, %c0_i32, %c0_i32_0 : i32, i32, i32
  }
  func.func @transform_6(%arg0: i32) -> (i32, i32, i32) {
    %c0_i32 = arith.constant 0 : i32
    %c0_i32_0 = arith.constant 0 : i32
    %c0_i32_1 = arith.constant 0 : i32
    return %arg0, %c0_i32, %c0_i32_0 : i32, i32, i32
  }
  func.func @transform_7(%arg0: i32) -> (i32, i32, i32) {
    %c0_i32 = arith.constant 0 : i32
    %c0_i32_0 = arith.constant 0 : i32
    %c0_i32_1 = arith.constant 0 : i32
    return %arg0, %c0_i32, %c0_i32_0 : i32, i32, i32
  }
  func.func @transform_8(%arg0: i32) -> (i32, i32, i32) {
    %c0_i32 = arith.constant 0 : i32
    %c0_i32_0 = arith.constant 0 : i32
    %c0_i32_1 = arith.constant 0 : i32
    return %arg0, %c0_i32, %c0_i32_0 : i32, i32, i32
  }
  func.func @transform_9(%arg0: i32) -> (i32, i32, i32) {
    %c0_i32 = arith.constant 0 : i32
    %c0_i32_0 = arith.constant 0 : i32
    %c0_i32_1 = arith.constant 0 : i32
    return %arg0, %c0_i32, %c0_i32_0 : i32, i32, i32
  }
  func.func @transform_10(%arg0: i32) -> (i32, i32, i32) {
    %c0_i32 = arith.constant 0 : i32
    %c0_i32_0 = arith.constant 0 : i32
    %c0_i32_1 = arith.constant 0 : i32
    return %arg0, %c0_i32, %c0_i32_0 : i32, i32, i32
  }
  func.func @transform_11(%arg0: i32) -> (i32, i32, i32) {
    %c0_i32 = arith.constant 0 : i32
    %c0_i32_0 = arith.constant 0 : i32
    %c0_i32_1 = arith.constant 0 : i32
    return %arg0, %c0_i32, %c0_i32_0 : i32, i32, i32
  }
  func.func @transform_12(%arg0: i32) -> (i32, i32, i32) {
    %c0_i32 = arith.constant 0 : i32
    %c0_i32_0 = arith.constant 0 : i32
    %c0_i32_1 = arith.constant 0 : i32
    return %arg0, %c0_i32, %c0_i32_0 : i32, i32, i32
  }
  func.func @transform_13(%arg0: i32) -> (i32, i32, i32) {
    %c0_i32 = arith.constant 0 : i32
    %c0_i32_0 = arith.constant 0 : i32
    %c0_i32_1 = arith.constant 0 : i32
    return %arg0, %c0_i32, %c0_i32_0 : i32, i32, i32
  }
  func.func @transform_14(%arg0: i32) -> (i32, i32) {
    %c0_i32 = arith.constant 0 : i32
    %c0_i32_0 = arith.constant 0 : i32
    %c0_i32_1 = arith.constant 0 : i32
    return %c0_i32, %c0_i32_0 : i32, i32
  }
}

</mosaic_0001>

<llo_original>
// kernel: tpu_custom_call.1
$region0: #{tpu_custom_call.1}
  #allocation0 [shape = 'u32[]', space=smem, size = 0x4, offset = 0x4, fixed_abs, tag = 'smem constant byte address 0x4 - core index']
  #allocation1 [shape = 'u32[144,128]{1,0:T(1,128)}', space=vmem, size = 0x12000, scoped, tag = 'internal scratch']
  %s0 = inlined_call_operand.vmem [shape: f32[16,128], index: 0, kind: input, shape index: {}]
  %s1 = inlined_call_operand.vmem [shape: f32[32,16], index: 1, kind: input, shape index: {}]
  %s2 = inlined_call_operand.vmem [shape: f32[16,32], index: 2, kind: input, shape index: {}]
  %s3 = inlined_call_operand.vmem [shape: f32[32,16], index: 3, kind: input, shape index: {}]
  %s4 = inlined_call_operand.vmem [shape: f32[16,1], index: 4, kind: input, shape index: {}]
  %s5 = inlined_call_operand.vmem [shape: f32[3,1,128], index: 5, kind: input, shape index: {}]
  %s6 = inlined_call_operand.vmem [shape: f32[3,16,128], index: 6, kind: input, shape index: {}]
  %s7 = inlined_call_operand.vmem [shape: f32[3,1,128], index: 7, kind: input, shape index: {}]
  %s8 = inlined_call_operand.hbm [shape: f32[3,128,128], index: 8, kind: input, shape index: {}]
  %s9 = inlined_call_operand.vmem [shape: f32[3,1,128], index: 9, kind: input, shape index: {}]
  %s10 = inlined_call_operand.hbm [shape: f32[3,128,128], index: 10, kind: input, shape index: {}]
  %s11 = inlined_call_operand.vmem [shape: f32[3,1,128], index: 11, kind: input, shape index: {}]
  %s12 = inlined_call_operand.hbm [shape: f32[3,128,128], index: 12, kind: input, shape index: {}]
  %s13 = inlined_call_operand.vmem [shape: f32[3,1,128], index: 13, kind: input, shape index: {}]
  %s14 = inlined_call_operand.hbm [shape: f32[16,128], index: 14, kind: output, shape index: {}]
  %s15 = sld [smem:[#allocation0]]
  $region105: #{tpu_custom_call.1} parent=0
    _
  %s17 = ssub.s32 1, %s15
  %s18 = scalar_select 0, %s17, %s15
  $region1: #{tpu_custom_call.1} parent=0
    #allocation2 [shape = 'u8[131072]{0}', space=vmem, size = 0x20000, scoped, tag = 'input window, operand 8']
    #allocation3 [shape = 's32[2]{0}', space=sflag, size = 0x8, scoped, tag = 'scoped memory for tpu_custom_call.1']
    #allocation4 [shape = 's32[2]{0}', space=sflag, size = 0x8, scoped, tag = 'scoped memory for tpu_custom_call.1']
    #allocation5 [shape = 'u8[131072]{0}', space=vmem, size = 0x20000, scoped, tag = 'input window, operand 10']
    #allocation6 [shape = 's32[2]{0}', space=sflag, size = 0x8, scoped, tag = 'scoped memory for tpu_custom_call.1']
    #allocation7 [shape = 'u8[131072]{0}', space=vmem, size = 0x20000, scoped, tag = 'input window, operand 12']
    #allocation8 [shape = 'u8[8192]{0}', space=vmem, size = 0x2000, scoped, tag = 'output window, operand 0, single buffered']
    %19 = vsyncpa [#allocation3], 0
    %s20 = scalar_lea.sflag [#allocation3], 1
    %21 = vsyncpa %s20, 0
    %22 = vsyncpa [#allocation6], 0
    %s23 = scalar_lea.sflag [#allocation6], 1
    %24 = vsyncpa %s23, 0
    %25 = vsyncpa [#allocation4], 0
    loop: start=0, step=1, limit=5
    $region2: #{tpu_custom_call.1} parent=1 // loop_pre_header
      _
    $region3: #{tpu_custom_call.1} parent=1 // loop_header
      %s27 = sphi 0, %s31
      %p28 = scmp.ge.s32.totalorder %s27, 5
      %s35 = sphi 0, %s35
      %s37 = sphi 0, %s35
      %s38 = sphi 0, %s37
      %s52 = sphi 0, %s38
      %s56 = sphi 0, %s56
      %s58 = sphi 0, %s56
      %s59 = sphi 0, %s58
      %s73 = sphi 0, %s59
      %s77 = sphi 0, %s77
      %s79 = sphi 0, %s77
      %s80 = sphi 0, %s79
      %s94 = sphi 0, %s80
      %s98 = sphi 0, %s98
      %s100 = sphi 0, %s98
      %s101 = sphi 0, %s100
      %s115 = sphi 0, %s101
      %s119 = sphi 0, %s119
      %s121 = sphi 0, %s119
      %s122 = sphi 0, %s121
      %s136 = sphi 0, %s122
      %s142 = sphi 0, %s144
      %s145 = sphi 0, %s142
      %s146 = sphi 0, %s145
      %s162 = sphi 0, %s146
      %s168 = sphi 0, %s170
      %s171 = sphi 0, %s168
      %s172 = sphi 0, %s171
      %s188 = sphi 0, %s172
      %s194 = sphi 0, %s196
      %s197 = sphi 0, %s194
      %s198 = sphi 0, %s197
      %s214 = sphi 0, %s198
      %s220 = sphi 0, %s222
      %s223 = sphi 0, %s220
      %s224 = sphi 0, %s223
      %s240 = sphi 0, %s224
      %s246 = sphi 0, %s248
      %s249 = sphi 0, %s246
      %s250 = sphi 0, %s249
      %s266 = sphi 0, %s250
      %s272 = sphi 0, %s274
      %s275 = sphi 0, %s272
      %s276 = sphi 0, %s275
      %s292 = sphi 0, %s276
      %s298 = sphi 0, %s300
      %s301 = sphi 0, %s298
      %s302 = sphi 0, %s301
      %s318 = sphi 0, %s302
      %s324 = sphi 0, %s326
      %s327 = sphi 0, %s324
      %s328 = sphi 0, %s327
      %s344 = sphi 0, %s328
      %s350 = sphi 0, %s352
      %s353 = sphi 0, %s350
      %s354 = sphi 0, %s353
      %s370 = sphi 0, %s354
      %s374 = sphi 0, %s374
      %s376 = sphi 0, %s374
      %s377 = sphi 0, %s376
      %s391 = sphi 0, %s377
    $region4: #{tpu_custom_call.1} parent=1 // loop_header_branch
      %30 = sbr.rel (%p28) target = $region8
    $region5: #{tpu_custom_call.1} parent=1 // loop_body
      %s32 = ssub.s32 %s27, 1
      %s33 = ssub.s32 %s27, 2
      %s34 = sadd.s32 %s27, 1
      %s36 = sadd.s32 %s35, 1
      %p39 = scmp.eq.s32.totalorder %s27, 2
      %p40 = scmp.ne.s32.totalorder %s35, %s37
      %p41 = scmp.eq.s32.totalorder %s27, 0
      %p42 = por %p40, %p41
      %p43 = scmp.ne.s32.totalorder %s35, %s37
      %p44 = scmp.eq.s32.totalorder %s32, 2
      %p45 = por %p43, %p44
      %p46 = scmp.ne.s32.totalorder %s37, %s38
      %p47 = scmp.eq.s32.totalorder %s32, 0
      %p48 = por %p46, %p47
      %p49 = scmp.ne.s32.totalorder %s37, %s38
      %p50 = scmp.eq.s32.totalorder %s33, 2
      %p51 = por %p49, %p50
      %p53 = scmp.ne.s32.totalorder %s38, %s52
      %p54 = scmp.eq.s32.totalorder %s33, 0
      %p55 = por %p53, %p54
      %s57 = sadd.s32 %s56, 1
      %p60 = scmp.eq.s32.totalorder %s27, 2
      %p61 = scmp.ne.s32.totalorder %s56, %s58
      %p62 = scmp.eq.s32.totalorder %s27, 0
      %p63 = por %p61, %p62
      %p64 = scmp.ne.s32.totalorder %s56, %s58
      %p65 = scmp.eq.s32.totalorder %s32, 2
      %p66 = por %p64, %p65
      %p67 = scmp.ne.s32.totalorder %s58, %s59
      %p68 = scmp.eq.s32.totalorder %s32, 0
      %p69 = por %p67, %p68
      %p70 = scmp.ne.s32.totalorder %s58, %s59
      %p71 = scmp.eq.s32.totalorder %s33, 2
      %p72 = por %p70, %p71
      %p74 = scmp.ne.s32.totalorder %s59, %s73
      %p75 = scmp.eq.s32.totalorder %s33, 0
      %p76 = por %p74, %p75
      %s78 = sadd.s32 %s77, 1
      %p81 = scmp.eq.s32.totalorder %s27, 2
      %p82 = scmp.ne.s32.totalorder %s77, %s79
      %p83 = scmp.eq.s32.totalorder %s27, 0
      %p84 = por %p82, %p83
      %p85 = scmp.ne.s32.totalorder %s77, %s79
      %p86 = scmp.eq.s32.totalorder %s32, 2
      %p87 = por %p85, %p86
      %p88 = scmp.ne.s32.totalorder %s79, %s80
      %p89 = scmp.eq.s32.totalorder %s32, 0
      %p90 = por %p88, %p89
      %p91 = scmp.ne.s32.totalorder %s79, %s80
      %p92 = scmp.eq.s32.totalorder %s33, 2
      %p93 = por %p91, %p92
      %p95 = scmp.ne.s32.totalorder %s80, %s94
      %p96 = scmp.eq.s32.totalorder %s33, 0
      %p97 = por %p95, %p96
      %s99 = sadd.s32 %s98, 1
      %p102 = scmp.eq.s32.totalorder %s27, 2
      %p103 = scmp.ne.s32.totalorder %s98, %s100
      %p104 = scmp.eq.s32.totalorder %s27, 0
      %p105 = por %p103, %p104
      %p106 = scmp.ne.s32.totalorder %s98, %s100
      %p107 = scmp.eq.s32.totalorder %s32, 2
      %p108 = por %p106, %p107
      %p109 = scmp.ne.s32.totalorder %s100, %s101
      %p110 = scmp.eq.s32.totalorder %s32, 0
      %p111 = por %p109, %p110
      %p112 = scmp.ne.s32.totalorder %s100, %s101
      %p113 = scmp.eq.s32.totalorder %s33, 2
      %p114 = por %p112, %p113
      %p116 = scmp.ne.s32.totalorder %s101, %s115
      %p117 = scmp.eq.s32.totalorder %s33, 0
      %p118 = por %p116, %p117
      %s120 = sadd.s32 %s119, 1
      %p123 = scmp.eq.s32.totalorder %s27, 2
      %p124 = scmp.ne.s32.totalorder %s119, %s121
      %p125 = scmp.eq.s32.totalorder %s27, 0
      %p126 = por %p124, %p125
      %p127 = scmp.ne.s32.totalorder %s119, %s121
      %p128 = scmp.eq.s32.totalorder %s32, 2
      %p129 = por %p127, %p128
      %p130 = scmp.ne.s32.totalorder %s121, %s122
      %p131 = scmp.eq.s32.totalorder %s32, 0
      %p132 = por %p130, %p131
      %p133 = scmp.ne.s32.totalorder %s121, %s122
      %p134 = scmp.eq.s32.totalorder %s33, 2
      %p135 = por %p133, %p134
      %p137 = scmp.ne.s32.totalorder %s122, %s136
      %p138 = scmp.eq.s32.totalorder %s33, 0
      %p139 = por %p137, %p138
      %s140 = ssub.s32 %s27, %s34
      %p141 = scmp.eq.s32.totalorder %s140, 0
      %s143 = sadd.s32 %s142, 1
      %s144 = scalar_select %p141, %s142, %s143
      %p147 = pneg %p141
      %p148 = scmp.eq.s32.totalorder %s27, 2
      %p149 = por %p147, %p148
      %p150 = scmp.ne.s32.totalorder %s142, %s145
      %p151 = scmp.eq.s32.totalorder %s27, 0
      %p152 = por %p150, %p151
      %p153 = scmp.ne.s32.totalorder %s142, %s145
      %p154 = scmp.eq.s32.totalorder %s32, 2
      %p155 = por %p153, %p154
      %p156 = scmp.ne.s32.totalorder %s145, %s146
      %p157 = scmp.eq.s32.totalorder %s32, 0
      %p158 = por %p156, %p157
      %p159 = scmp.ne.s32.totalorder %s145, %s146
      %p160 = scmp.eq.s32.totalorder %s33, 2
      %p161 = por %p159, %p160
      %p163 = scmp.ne.s32.totalorder %s146, %s162
      %p164 = scmp.eq.s32.totalorder %s33, 0
      %p165 = por %p163, %p164
      %s166 = ssub.s32 %s27, %s34
      %p167 = scmp.eq.s32.totalorder %s166, 0
      %s169 = sadd.s32 %s168, 1
      %s170 = scalar_select %p167, %s168, %s169
      %p173 = pneg %p167
      %p174 = scmp.eq.s32.totalorder %s27, 2
      %p175 = por %p173, %p174
      %p176 = scmp.ne.s32.totalorder %s168, %s171
      %p177 = scmp.eq.s32.totalorder %s27, 0
      %p178 = por %p176, %p177
      %p179 = scmp.ne.s32.totalorder %s168, %s171
      %p180 = scmp.eq.s32.totalorder %s32, 2
      %p181 = por %p179, %p180
      %p182 = scmp.ne.s32.totalorder %s171, %s172
      %p183 = scmp.eq.s32.totalorder %s32, 0
      %p184 = por %p182, %p183
      %p185 = scmp.ne.s32.totalorder %s171, %s172
      %p186 = scmp.eq.s32.totalorder %s33, 2
      %p187 = por %p185, %p186
      %p189 = scmp.ne.s32.totalorder %s172, %s188
      %p190 = scmp.eq.s32.totalorder %s33, 0
      %p191 = por %p189, %p190
      %s192 = ssub.s32 %s27, %s34
      %p193 = scmp.eq.s32.totalorder %s192, 0
      %s195 = sadd.s32 %s194, 1
      %s196 = scalar_select %p193, %s194, %s195
      %p199 = pneg %p193
      %p200 = scmp.eq.s32.totalorder %s27, 2
      %p201 = por %p199, %p200
      %p202 = scmp.ne.s32.totalorder %s194, %s197
      %p203 = scmp.eq.s32.totalorder %s27, 0
      %p204 = por %p202, %p203
      %p205 = scmp.ne.s32.totalorder %s194, %s197
      %p206 = scmp.eq.s32.totalorder %s32, 2
      %p207 = por %p205, %p206
      %p208 = scmp.ne.s32.totalorder %s197, %s198
      %p209 = scmp.eq.s32.totalorder %s32, 0
      %p210 = por %p208, %p209
      %p211 = scmp.ne.s32.totalorder %s197, %s198
      %p212 = scmp.eq.s32.totalorder %s33, 2
      %p213 = por %p211, %p212
      %p215 = scmp.ne.s32.totalorder %s198, %s214
      %p216 = scmp.eq.s32.totalorder %s33, 0
      %p217 = por %p215, %p216
      %s218 = ssub.s32 %s27, %s34
      %p219 = scmp.eq.s32.totalorder %s218, 0
      %s221 = sadd.s32 %s220, 1
      %s222 = scalar_select %p219, %s220, %s221
      %p225 = pneg %p219
      %p226 = scmp.eq.s32.totalorder %s27, 2
      %p227 = por %p225, %p226
      %p228 = scmp.ne.s32.totalorder %s220, %s223
      %p229 = scmp.eq.s32.totalorder %s27, 0
      %p230 = por %p228, %p229
      %p231 = scmp.ne.s32.totalorder %s220, %s223
      %p232 = scmp.eq.s32.totalorder %s32, 2
      %p233 = por %p231, %p232
      %p234 = scmp.ne.s32.totalorder %s223, %s224
      %p235 = scmp.eq.s32.totalorder %s32, 0
      %p236 = por %p234, %p235
      %p237 = scmp.ne.s32.totalorder %s223, %s224
      %p238 = scmp.eq.s32.totalorder %s33, 2
      %p239 = por %p237, %p238
      %p241 = scmp.ne.s32.totalorder %s224, %s240
      %p242 = scmp.eq.s32.totalorder %s33, 0
      %p243 = por %p241, %p242
      %s244 = ssub.s32 %s27, %s34
      %p245 = scmp.eq.s32.totalorder %s244, 0
      %s247 = sadd.s32 %s246, 1
      %s248 = scalar_select %p245, %s246, %s247
      %p251 = pneg %p245
      %p252 = scmp.eq.s32.totalorder %s27, 2
      %p253 = por %p251, %p252
      %p254 = scmp.ne.s32.totalorder %s246, %s249
      %p255 = scmp.eq.s32.totalorder %s27, 0
      %p256 = por %p254, %p255
      %p257 = scmp.ne.s32.totalorder %s246, %s249
      %p258 = scmp.eq.s32.totalorder %s32, 2
      %p259 = por %p257, %p258
      %p260 = scmp.ne.s32.totalorder %s249, %s250
      %p261 = scmp.eq.s32.totalorder %s32, 0
      %p262 = por %p260, %p261
      %p263 = scmp.ne.s32.totalorder %s249, %s250
      %p264 = scmp.eq.s32.totalorder %s33, 2
      %p265 = por %p263, %p264
      %p267 = scmp.ne.s32.totalorder %s250, %s266
      %p268 = scmp.eq.s32.totalorder %s33, 0
      %p269 = por %p267, %p268
      %s270 = ssub.s32 %s27, %s34
      %p271 = scmp.eq.s32.totalorder %s270, 0
      %s273 = sadd.s32 %s272, 1
      %s274 = scalar_select %p271, %s272, %s273
      %p277 = pneg %p271
      %p278 = scmp.eq.s32.totalorder %s27, 2
      %p279 = por %p277, %p278
      %p280 = scmp.ne.s32.totalorder %s272, %s275
      %p281 = scmp.eq.s32.totalorder %s27, 0
      %p282 = por %p280, %p281
      %p283 = scmp.ne.s32.totalorder %s272, %s275
      %p284 = scmp.eq.s32.totalorder %s32, 2
      %p285 = por %p283, %p284
      %p286 = scmp.ne.s32.totalorder %s275, %s276
      %p287 = scmp.eq.s32.totalorder %s32, 0
      %p288 = por %p286, %p287
      %p289 = scmp.ne.s32.totalorder %s275, %s276
      %p290 = scmp.eq.s32.totalorder %s33, 2
      %p291 = por %p289, %p290
      %p293 = scmp.ne.s32.totalorder %s276, %s292
      %p294 = scmp.eq.s32.totalorder %s33, 0
      %p295 = por %p293, %p294
      %s296 = ssub.s32 %s27, %s34
      %p297 = scmp.eq.s32.totalorder %s296, 0
      %s299 = sadd.s32 %s298, 1
      %s300 = scalar_select %p297, %s298, %s299
      %p303 = pneg %p297
      %p304 = scmp.eq.s32.totalorder %s27, 2
      %p305 = por %p303, %p304
      %p306 = scmp.ne.s32.totalorder %s298, %s301
      %p307 = scmp.eq.s32.totalorder %s27, 0
      %p308 = por %p306, %p307
      %p309 = scmp.ne.s32.totalorder %s298, %s301
      %p310 = scmp.eq.s32.totalorder %s32, 2
      %p311 = por %p309, %p310
      %p312 = scmp.ne.s32.totalorder %s301, %s302
      %p313 = scmp.eq.s32.totalorder %s32, 0
      %p314 = por %p312, %p313
      %p315 = scmp.ne.s32.totalorder %s301, %s302
      %p316 = scmp.eq.s32.totalorder %s33, 2
      %p317 = por %p315, %p316
      %p319 = scmp.ne.s32.totalorder %s302, %s318
      %p320 = scmp.eq.s32.totalorder %s33, 0
      %p321 = por %p319, %p320
      %s322 = ssub.s32 %s27, %s34
      %p323 = scmp.eq.s32.totalorder %s322, 0
      %s325 = sadd.s32 %s324, 1
      %s326 = scalar_select %p323, %s324, %s325
      %p329 = pneg %p323
      %p330 = scmp.eq.s32.totalorder %s27, 2
      %p331 = por %p329, %p330
      %p332 = scmp.ne.s32.totalorder %s324, %s327
      %p333 = scmp.eq.s32.totalorder %s27, 0
      %p334 = por %p332, %p333
      %p335 = scmp.ne.s32.totalorder %s324, %s327
      %p336 = scmp.eq.s32.totalorder %s32, 2
      %p337 = por %p335, %p336
      %p338 = scmp.ne.s32.totalorder %s327, %s328
      %p339 = scmp.eq.s32.totalorder %s32, 0
      %p340 = por %p338, %p339
      %p341 = scmp.ne.s32.totalorder %s327, %s328
      %p342 = scmp.eq.s32.totalorder %s33, 2
      %p343 = por %p341, %p342
      %p345 = scmp.ne.s32.totalorder %s328, %s344
      %p346 = scmp.eq.s32.totalorder %s33, 0
      %p347 = por %p345, %p346
      %s348 = ssub.s32 %s27, %s34
      %p349 = scmp.eq.s32.totalorder %s348, 0
      %s351 = sadd.s32 %s350, 1
      %s352 = scalar_select %p349, %s350, %s351
      %p355 = pneg %p349
      %p356 = scmp.eq.s32.totalorder %s27, 2
      %p357 = por %p355, %p356
      %p358 = scmp.ne.s32.totalorder %s350, %s353
      %p359 = scmp.eq.s32.totalorder %s27, 0
      %p360 = por %p358, %p359
      %p361 = scmp.ne.s32.totalorder %s350, %s353
      %p362 = scmp.eq.s32.totalorder %s32, 2
      %p363 = por %p361, %p362
      %p364 = scmp.ne.s32.totalorder %s353, %s354
      %p365 = scmp.eq.s32.totalorder %s32, 0
      %p366 = por %p364, %p365
      %p367 = scmp.ne.s32.totalorder %s353, %s354
      %p368 = scmp.eq.s32.totalorder %s33, 2
      %p369 = por %p367, %p368
      %p371 = scmp.ne.s32.totalorder %s354, %s370
      %p372 = scmp.eq.s32.totalorder %s33, 0
      %p373 = por %p371, %p372
      %s375 = sadd.s32 %s374, 1
      %p378 = scmp.eq.s32.totalorder %s27, 2
      %p379 = scmp.ne.s32.totalorder %s374, %s376
      %p380 = scmp.eq.s32.totalorder %s27, 0
      %p381 = por %p379, %p380
      %p382 = scmp.ne.s32.totalorder %s374, %s376
      %p383 = scmp.eq.s32.totalorder %s32, 2
      %p384 = por %p382, %p383
      %p385 = scmp.ne.s32.totalorder %s376, %s377
      %p386 = scmp.eq.s32.totalorder %s32, 0
      %p387 = por %p385, %p386
      %p388 = scmp.ne.s32.totalorder %s376, %s377
      %p389 = scmp.eq.s32.totalorder %s33, 2
      %p390 = por %p388, %p389
      %p392 = scmp.ne.s32.totalorder %s377, %s391
      %p393 = scmp.eq.s32.totalorder %s33, 0
      %p394 = por %p392, %p393
      %p395 = scmp.le.s32.totalorder 1, %s27
      %p396 = scmp.lt.s32.totalorder %s27, 4
      %p397 = pnand %p395, %p396
      %p398 = pneg %p397
      // Predicated region
      $region9: #{tpu_custom_call.1} parent=5 // pred_check
        _
      $region10: #{tpu_custom_call.1} parent=5 // pred_check_branch
        %400 = sbr.rel (%p397) target = $region12
      $region11: #{tpu_custom_call.1} parent=5 // pred_region
        %s401 = ssub.s32 %s27, 1
        // Predicated region
        $region13: #{tpu_custom_call.1} parent=11 // pred_check
          %p402 = pneg %p48
        $region14: #{tpu_custom_call.1} parent=11 // pred_check_branch
          %404 = sbr.rel (%p402) target = $region16
        $region15: #{tpu_custom_call.1} parent=11 // pred_region
          _
        $region16: #{tpu_custom_call.1} parent=11 // pred_fallthru
          _
        // Predicated region
        $region17: #{tpu_custom_call.1} parent=11 // pred_check
          %p405 = pneg %p69
        $region18: #{tpu_custom_call.1} parent=11 // pred_check_branch
          %407 = sbr.rel (%p405) target = $region20
        $region19: #{tpu_custom_call.1} parent=11 // pred_region
          _
        $region20: #{tpu_custom_call.1} parent=11 // pred_fallthru
          _
        // Predicated region
        $region21: #{tpu_custom_call.1} parent=11 // pred_check
          %p408 = pneg %p90
        $region22: #{tpu_custom_call.1} parent=11 // pred_check_branch
          %410 = sbr.rel (%p408) target = $region24
        $region23: #{tpu_custom_call.1} parent=11 // pred_region
          _
        $region24: #{tpu_custom_call.1} parent=11 // pred_fallthru
          _
        // Predicated region
        $region25: #{tpu_custom_call.1} parent=11 // pred_check
          %p411 = pneg %p111
        $region26: #{tpu_custom_call.1} parent=11 // pred_check_branch
          %413 = sbr.rel (%p411) target = $region28
        $region27: #{tpu_custom_call.1} parent=11 // pred_region
          _
        $region28: #{tpu_custom_call.1} parent=11 // pred_fallthru
          _
        // Predicated region
        $region29: #{tpu_custom_call.1} parent=11 // pred_check
          %p414 = pneg %p132
        $region30: #{tpu_custom_call.1} parent=11 // pred_check_branch
          %416 = sbr.rel (%p414) target = $region32
        $region31: #{tpu_custom_call.1} parent=11 // pred_region
          _
        $region32: #{tpu_custom_call.1} parent=11 // pred_fallthru
          _
      $region12: #{tpu_custom_call.1} parent=5 // pred_fallthru
        _
      %p417 = scmp.lt.s32.totalorder %s27, 3
      // Predicated region
      $region33: #{tpu_custom_call.1} parent=5 // pred_check
        %p418 = pneg %p417
      $region34: #{tpu_custom_call.1} parent=5 // pred_check_branch
        %420 = sbr.rel (%p418) target = $region36
      $region35: #{tpu_custom_call.1} parent=5 // pred_region
        // Predicated region
        $region37: #{tpu_custom_call.1} parent=35 // pred_check
          %p421 = pneg %p152
        $region38: #{tpu_custom_call.1} parent=35 // pred_check_branch
          %423 = sbr.rel (%p421) target = $region40
        $region39: #{tpu_custom_call.1} parent=35 // pred_region
          %p424 = scmp.lt.s32.totalorder %s27, 2
          %s425 = scalar_select %p424, %s27, 2
          %s426 = scalar_lea.vmem %s5, %s425
        $region40: #{tpu_custom_call.1} parent=35 // pred_fallthru
          _
        // Predicated region
        $region41: #{tpu_custom_call.1} parent=35 // pred_check
          %p427 = pneg %p178
        $region42: #{tpu_custom_call.1} parent=35 // pred_check_branch
          %429 = sbr.rel (%p427) target = $region44
        $region43: #{tpu_custom_call.1} parent=35 // pred_region
          %p430 = scmp.lt.s32.totalorder %s27, 2
          %s431 = scalar_select %p430, %s27, 2
          %s432 = smul.addr %s431, 2
          %s433 = smul.addr %s432, 8
          %s434 = scalar_lea.vmem %s6, %s433
        $region44: #{tpu_custom_call.1} parent=35 // pred_fallthru
          _
        // Predicated region
        $region45: #{tpu_custom_call.1} parent=35 // pred_check
          %p435 = pneg %p204
        $region46: #{tpu_custom_call.1} parent=35 // pred_check_branch
          %437 = sbr.rel (%p435) target = $region48
        $region47: #{tpu_custom_call.1} parent=35 // pred_region
          %p438 = scmp.lt.s32.totalorder %s27, 2
          %s439 = scalar_select %p438, %s27, 2
          %s440 = scalar_lea.vmem %s7, %s439
        $region48: #{tpu_custom_call.1} parent=35 // pred_fallthru
          _
        // Predicated region
        $region49: #{tpu_custom_call.1} parent=35 // pred_check
          %p441 = pneg %p230
        $region50: #{tpu_custom_call.1} parent=35 // pred_check_branch
          %443 = sbr.rel (%p441) target = $region52
        $region51: #{tpu_custom_call.1} parent=35 // pred_region
          %s444 = sand.u32 %s220, 1
          %s445 = scalar_lea.sflag [#allocation3], %s444
          %s446 = sand.u32 %s220, 1
          %s447 = smul.addr %s446, 128
          %s448 = scalar_lea.vmem [#allocation2], %s447
          %s450 = ssub.s32 2048, 2048
          %451 = vsyncadd %s445, %s450
          %s452 = smul.addr %s27, 16
          %s453 = smul.addr %s452, 128
          %s454 = scalar_lea.hbm %s8, %s453
          %s455 = sshll.u32 %s448, 4
          %s456 = int_to_ptr.vmem [resolvable:$true] %s455
          %461 = dma.hbm_to_vmem [thread:$0]  %s454, 2048, %s456, %s445, 128, 128, 8
        $region52: #{tpu_custom_call.1} parent=35 // pred_fallthru
          _
        // Predicated region
        $region53: #{tpu_custom_call.1} parent=35 // pred_check
          %p462 = pneg %p256
        $region54: #{tpu_custom_call.1} parent=35 // pred_check_branch
          %464 = sbr.rel (%p462) target = $region56
        $region55: #{tpu_custom_call.1} parent=35 // pred_region
          %p465 = scmp.lt.s32.totalorder %s27, 2
          %s466 = scalar_select %p465, %s27, 2
          %s467 = scalar_lea.vmem %s9, %s466
        $region56: #{tpu_custom_call.1} parent=35 // pred_fallthru
          _
        // Predicated region
        $region57: #{tpu_custom_call.1} parent=35 // pred_check
          %p468 = pneg %p282
        $region58: #{tpu_custom_call.1} parent=35 // pred_check_branch
          %470 = sbr.rel (%p468) target = $region60
        $region59: #{tpu_custom_call.1} parent=35 // pred_region
          %s471 = sand.u32 %s27, 1
          %s472 = scalar_lea.sflag [#allocation6], %s471
          %s473 = sand.u32 %s272, 1
          %s474 = smul.addr %s473, 128
          %s475 = scalar_lea.vmem [#allocation5], %s474
          %s477 = ssub.s32 2048, 2048
          %478 = vsyncadd %s472, %s477
          %s479 = smul.addr %s27, 16
          %s480 = smul.addr %s479, 128
          %s481 = scalar_lea.hbm %s10, %s480
          %s482 = sshll.u32 %s475, 4
          %s483 = int_to_ptr.vmem [resolvable:$true] %s482
          %488 = dma.hbm_to_vmem [thread:$0]  %s481, 2048, %s483, %s472, 128, 128, 8
        $region60: #{tpu_custom_call.1} parent=35 // pred_fallthru
          _
        // Predicated region
        $region61: #{tpu_custom_call.1} parent=35 // pred_check
          %p489 = pneg %p308
        $region62: #{tpu_custom_call.1} parent=35 // pred_check_branch
          %491 = sbr.rel (%p489) target = $region64
        $region63: #{tpu_custom_call.1} parent=35 // pred_region
          %p492 = scmp.lt.s32.totalorder %s27, 2
          %s493 = scalar_select %p492, %s27, 2
          %s494 = scalar_lea.vmem %s11, %s493
        $region64: #{tpu_custom_call.1} parent=35 // pred_fallthru
          _
        // Predicated region
        $region65: #{tpu_custom_call.1} parent=35 // pred_check
          %p495 = pneg %p334
        $region66: #{tpu_custom_call.1} parent=35 // pred_check_branch
          %497 = sbr.rel (%p495) target = $region68
        $region67: #{tpu_custom_call.1} parent=35 // pred_region
          %s498 = sand.u32 %s27, 1
          %s499 = scalar_lea.sflag [#allocation6], %s498
          %s500 = sand.u32 %s324, 1
          %s501 = smul.addr %s500, 128
          %s502 = scalar_lea.vmem [#allocation7], %s501
          %s504 = ssub.s32 2048, 2048
          %505 = vsyncadd %s499, %s504
          %s506 = smul.addr %s27, 16
          %s507 = smul.addr %s506, 128
          %s508 = scalar_lea.hbm %s12, %s507
          %s509 = sshll.u32 %s502, 4
          %s510 = int_to_ptr.vmem [resolvable:$true] %s509
          %515 = dma.hbm_to_vmem [thread:$0]  %s508, 2048, %s510, %s499, 128, 128, 8
        $region68: #{tpu_custom_call.1} parent=35 // pred_fallthru
          _
        // Predicated region
        $region69: #{tpu_custom_call.1} parent=35 // pred_check
          %p516 = pneg %p360
        $region70: #{tpu_custom_call.1} parent=35 // pred_check_branch
          %518 = sbr.rel (%p516) target = $region72
        $region71: #{tpu_custom_call.1} parent=35 // pred_region
          %p519 = scmp.lt.s32.totalorder %s27, 2
          %s520 = scalar_select %p519, %s27, 2
          %s521 = scalar_lea.vmem %s13, %s520
        $region72: #{tpu_custom_call.1} parent=35 // pred_fallthru
          _
      $region36: #{tpu_custom_call.1} parent=5 // pred_fallthru
        _
      %p522 = scmp.le.s32.totalorder 1, %s27
      %p523 = scmp.lt.s32.totalorder %s27, 4
      %p524 = pnand %p522, %p523
      %p525 = pneg %p524
      // Predicated region
      $region73: #{tpu_custom_call.1} parent=5 // pred_check
        _
      $region74: #{tpu_custom_call.1} parent=5 // pred_check_branch
        %527 = sbr.rel (%p524) target = $region76
      $region75: #{tpu_custom_call.1} parent=5 // pred_region
        %s528 = ssub.s32 %s27, 1
        %s529 = sand.u32 %s223, 1
        %s530 = scalar_lea.sflag [#allocation3], %s529
        %s531 = sand.u32 %s223, 1
        %s532 = smul.addr %s531, 128
        %s533 = scalar_lea.vmem [#allocation2], %s532
        // Predicated region
        $region77: #{tpu_custom_call.1} parent=75 // pred_check
          %p534 = pneg %p236
        $region78: #{tpu_custom_call.1} parent=75 // pred_check_branch
          %536 = sbr.rel (%p534) target = $region80
        $region79: #{tpu_custom_call.1} parent=75 // pred_region
          %537 = dma.done %s530, 2048
        $region80: #{tpu_custom_call.1} parent=75 // pred_fallthru
          _
        %s538 = sand.u32 %s32, 1
        %s539 = scalar_lea.sflag [#allocation6], %s538
        %s540 = sand.u32 %s275, 1
        %s541 = smul.addr %s540, 128
        %s542 = scalar_lea.vmem [#allocation5], %s541
        // Predicated region
        $region81: #{tpu_custom_call.1} parent=75 // pred_check
          %p543 = pneg %p288
        $region82: #{tpu_custom_call.1} parent=75 // pred_check_branch
          %545 = sbr.rel (%p543) target = $region84
        $region83: #{tpu_custom_call.1} parent=75 // pred_region
          %546 = dma.done %s539, 2048
        $region84: #{tpu_custom_call.1} parent=75 // pred_fallthru
          _
        %s547 = sand.u32 %s32, 1
        %s548 = scalar_lea.sflag [#allocation6], %s547
        %s549 = sand.u32 %s327, 1
        %s550 = smul.addr %s549, 128
        %s551 = scalar_lea.vmem [#allocation7], %s550
        // Predicated region
        $region85: #{tpu_custom_call.1} parent=75 // pred_check
          %p552 = pneg %p340
        $region86: #{tpu_custom_call.1} parent=75 // pred_check_branch
          %554 = sbr.rel (%p552) target = $region88
        $region87: #{tpu_custom_call.1} parent=75 // pred_region
          %555 = dma.done %s548, 2048
        $region88: #{tpu_custom_call.1} parent=75 // pred_fallthru
          _
        %p556 = pneg %p48
        %p557 = pneg %p45
        %p558 = pneg %p69
        %p559 = pneg %p66
        %p560 = pneg %p90
        %p561 = pneg %p87
        %p562 = pneg %p111
        %p563 = pneg %p108
        %p564 = pneg %p132
        %p565 = pneg %p129
        %p566 = scmp.lt.s32.totalorder %s32, 2
        %s567 = scalar_select %p566, %s32, 2
        %s568 = scalar_lea.vmem %s5, %s567
        %p569 = pneg %p158
        %p570 = pneg %p155
        %p571 = scmp.lt.s32.totalorder %s32, 2
        %s572 = scalar_select %p571, %s32, 2
        %s573 = smul.addr %s572, 2
        %s574 = smul.addr %s573, 8
        %s575 = scalar_lea.vmem %s6, %s574
        %p576 = pneg %p184
        %p577 = pneg %p181
        %p578 = scmp.lt.s32.totalorder %s32, 2
        %s579 = scalar_select %p578, %s32, 2
        %s580 = scalar_lea.vmem %s7, %s579
        %p581 = pneg %p210
        %p582 = pneg %p207
        %s583 = sand.u32 %s223, 1
        %s584 = scalar_lea.sflag [#allocation3], %s583
        %s585 = sand.u32 %s223, 1
        %s586 = smul.addr %s585, 128
        %s587 = scalar_lea.vmem [#allocation2], %s586
        %p588 = pneg %p236
        %p589 = pneg %p233
        %p590 = scmp.lt.s32.totalorder %s32, 2
        %s591 = scalar_select %p590, %s32, 2
        %s592 = scalar_lea.vmem %s9, %s591
        %p593 = pneg %p262
        %p594 = pneg %p259
        %s595 = sand.u32 %s32, 1
        %s596 = scalar_lea.sflag [#allocation6], %s595
        %s597 = sand.u32 %s275, 1
        %s598 = smul.addr %s597, 128
        %s599 = scalar_lea.vmem [#allocation5], %s598
        %p600 = pneg %p288
        %p601 = pneg %p285
        %p602 = scmp.lt.s32.totalorder %s32, 2
        %s603 = scalar_select %p602, %s32, 2
        %s604 = scalar_lea.vmem %s11, %s603
        %p605 = pneg %p314
        %p606 = pneg %p311
        %s607 = sand.u32 %s32, 1
        %s608 = scalar_lea.sflag [#allocation6], %s607
        %s609 = sand.u32 %s327, 1
        %s610 = smul.addr %s609, 128
        %s611 = scalar_lea.vmem [#allocation7], %s610
        %p612 = pneg %p340
        %p613 = pneg %p337
        %p614 = scmp.lt.s32.totalorder %s32, 2
        %s615 = scalar_select %p614, %s32, 2
        %s616 = scalar_lea.vmem %s13, %s615
        %p617 = pneg %p366
        %p618 = pneg %p363
        %p619 = pneg %p387
        %p620 = pneg %p384
        %p621 = scmp.lt.s32.totalorder %s32, 2
        %s622 = scalar_select %p621, %s32, 2
        %s623 = scalar_lea.vmem %s5, %s622
        %p624 = scmp.lt.s32.totalorder %s32, 2
        %s625 = scalar_select %p624, %s32, 2
        %s626 = smul.addr %s625, 2
        %s627 = smul.addr %s626, 8
        %s628 = scalar_lea.vmem %s6, %s627
        %p629 = scmp.lt.s32.totalorder %s32, 2
        %s630 = scalar_select %p629, %s32, 2
        %s631 = scalar_lea.vmem %s7, %s630
        %p632 = scmp.lt.s32.totalorder %s32, 2
        %s633 = scalar_select %p632, %s32, 2
        %s634 = scalar_lea.vmem %s9, %s633
        %p635 = scmp.lt.s32.totalorder %s32, 2
        %s636 = scalar_select %p635, %s32, 2
        %s637 = scalar_lea.vmem %s11, %s636
        %p638 = scmp.lt.s32.totalorder %s32, 2
        %s639 = scalar_select %p638, %s32, 2
        %s640 = scalar_lea.vmem %s13, %s639
        %p641 = scmp.eq.s32.totalorder %s32, 0
        // Predicated region
        $region89: #{tpu_custom_call.1} parent=75 // pred_check
          %p642 = pneg %p641
        $region90: #{tpu_custom_call.1} parent=75 // pred_check_branch
          %644 = sbr.rel (%p642) target = $region92
        $region91: #{tpu_custom_call.1} parent=75 // pred_region
          %v645 = vld [vmem:[%s0] sm:$0xff]
          %v646 = vld [vmem:[%s0 + $0x8] sm:$0xff]
          %647 = vst [vmem:[#allocation8] sm:$0xff] %v645
          %648 = vst [vmem:[#allocation8 + $0x8] sm:$0xff] %v646
        $region92: #{tpu_custom_call.1} parent=75 // pred_fallthru
          _
        %v649 = vld [vmem:[#allocation8] sm:$0xff]
        %v650 = vld [vmem:[#allocation8 + $0x8] sm:$0xff]
        %v651 = vld [vmem:[%s3] sm:$0xff]
        %v652 = vld [vmem:[%s3 + $0x8] sm:$0xff]
        %v653 = vld [vmem:[%s3 + $0x10] sm:$0xff]
        %v654 = vld [vmem:[%s3 + $0x18] sm:$0xff]
        %v655 = vld [vmem:[%s628] sm:$0xff]
        %v656 = vld [vmem:[%s628 + $0x8] sm:$0xff]
        %v657 = vld [vmem:[%s631] sm:$0x1]
        %v659 = vlaneseq
        %v660 = vshrl.u32 %v659, 7
        %v661 = vsub.s32 0, %v660
        %v662 = vrot.slane %v657, %v661
        %vm664 = vcmask 130048
        %v666 = vsel %vm664, %v651, 0
        %v669 = vsel %vm664, %v652, 0
        %v672 = vsel %vm664, %v653, 0
        %v675 = vsel %vm664, %v654, 0
        %677 = vmatprep.subr.mxu0 0.0
        %678 = vmatpush1.msra.mxu0 %v655
        %679 = vmatprep.subr.mxu0 0.0
        %680 = vmatpush1.msra.mxu0 %v656
        %681 = vmatprep.subr.mxu0 0.0
        %682 = vmatpush1.msra.mxu0 0.0
        %683 = vmatprep.subr.mxu0 0.0
        %684 = vmatpush1.msra.mxu0 0.0
        %685 = vmatprep.subr.mxu0 0.0
        %686 = vmatpush1.msra.mxu0 0.0
        %687 = vmatprep.subr.mxu0 0.0
        %688 = vmatpush1.msra.mxu0 0.0
        %689 = vmatprep.subr.mxu0 0.0
        %690 = vmatpush1.msra.mxu0 0.0
        %691 = vmatprep.subr.mxu0 0.0
        %692 = vmatpush1.msra.mxu0 0.0
        %693 = vmatprep.subr.mxu0 0.0
        %694 = vmatpush1.msra.mxu0 0.0
        %695 = vmatprep.subr.mxu0 0.0
        %696 = vmatpush1.msra.mxu0 0.0
        %697 = vmatprep.subr.mxu0 0.0
        %698 = vmatpush1.msra.mxu0 0.0
        %699 = vmatprep.subr.mxu0 0.0
        %700 = vmatpush1.msra.mxu0 0.0
        %701 = vmatprep.subr.mxu0 0.0
        %702 = vmatpush1.msra.mxu0 0.0
        %703 = vmatprep.subr.mxu0 0.0
        %704 = vmatpush1.msra.mxu0 0.0
        %705 = vmatprep.subr.mxu0 0.0
        %706 = vmatpush1.msra.mxu0 0.0
        %707 = vmatprep.subr.mxu0 0.0
        %708 = vmatpush1.msra.mxu0 0.0
        %709 = vmatprep.subr.mxu0 0.0
        %710 = vmatpush1.msra.mxu0 0.0
        %711 = vmatprep.subr.mxu0 0.0
        %712 = vmatpush1.msra.mxu0 0.0
        %713 = vmatprep.subr.mxu0 0.0
        %714 = vmatpush1.msra.mxu0 0.0
        %715 = vmatprep.subr.mxu0 0.0
        %716 = vmatpush1.msra.mxu0 0.0
        %717 = vmatprep.subr.mxu0 0.0
        %718 = vmatpush1.msra.mxu0 0.0
        %719 = vmatprep.subr.mxu0 0.0
        %720 = vmatpush1.msra.mxu0 0.0
        %721 = vmatprep.subr.mxu0 0.0
        %722 = vmatpush1.msra.mxu0 0.0
        %723 = vmatprep.subr.mxu0 0.0
        %724 = vmatpush1.msra.mxu0 0.0
        %725 = vmatprep.subr.mxu0 0.0
        %726 = vmatpush1.msra.mxu0 0.0
        %727 = vmatprep.subr.mxu0 0.0
        %728 = vmatpush1.msra.mxu0 0.0
        %729 = vmatprep.subr.mxu0 0.0
        %730 = vmatpush1.msra.mxu0 0.0
        %731 = vmatprep.subr.mxu0 0.0
        %732 = vmatpush1.msra.mxu0 0.0
        %733 = vmatprep.subr.mxu0 0.0
        %734 = vmatpush1.msra.mxu0 0.0
        %735 = vmatprep.subr.mxu0 0.0
        %736 = vmatpush1.msra.mxu0 0.0
        %737 = vmatprep.subr.mxu0 0.0
        %738 = vmatpush1.msra.mxu0 0.0
        %739 = vmatprep.subr.mxu0 0.0
        %740 = vmatpush1.msra.mxu0 0.0
        %741 = vmatprep.mubr.f32.mxu0 0.0
        %742 = vmatmul.mubr.f32.gmra.mrb[0].mxu0 %v666
        %v743 = vpop.f32.mrb[0].mxu0
        %v744 = vadd.f32 %v662, %v743
        %v745 = vpop.f32.mrb[0].mxu0
        %746 = vmatprep.mubr.f32.mxu0 0.0
        %747 = vmatmul.mubr.f32.gmra.mrb[0].mxu0 %v669
        %v748 = vpop.f32.mrb[0].mxu0
        %v749 = vadd.f32 %v662, %v748
        %v750 = vpop.f32.mrb[0].mxu0
        %751 = vmatprep.mubr.f32.mxu0 0.0
        %752 = vmatmul.mubr.f32.gmra.mrb[0].mxu0 %v672
        %v753 = vpop.f32.mrb[0].mxu0
        %v754 = vadd.f32 %v662, %v753
        %v755 = vpop.f32.mrb[0].mxu0
        %756 = vmatprep.mubr.f32.mxu0 0.0
        %757 = vmatmul.mubr.f32.gmra.mrb[0].mxu0 %v675
        %v758 = vpop.f32.mrb[0].mxu0
        %v759 = vadd.f32 %v662, %v758
        %v760 = vpop.f32.mrb[0].mxu0
        %761 = vdwg.mxu0
        %v762 = vmax.f32 %v744, 0.0
        %v763 = vmax.f32 %v749, 0.0
        %v764 = vmax.f32 %v754, 0.0
        %v765 = vmax.f32 %v759, 0.0
        %v766 = vld [vmem:[%s533] sm:$0xff]
        %v767 = vld [vmem:[%s533 + $0x8] sm:$0xff]
        %v768 = vld [vmem:[%s533 + $0x10] sm:$0xff]
        %v769 = vld [vmem:[%s533 + $0x18] sm:$0xff]
        %v770 = vld [vmem:[%s533 + $0x20] sm:$0xff]
        %v771 = vld [vmem:[%s533 + $0x28] sm:$0xff]
        %v772 = vld [vmem:[%s533 + $0x30] sm:$0xff]
        %v773 = vld [vmem:[%s533 + $0x38] sm:$0xff]
        %v774 = vld [vmem:[%s533 + $0x40] sm:$0xff]
        %v775 = vld [vmem:[%s533 + $0x48] sm:$0xff]
        %v776 = vld [vmem:[%s533 + $0x50] sm:$0xff]
        %v777 = vld [vmem:[%s533 + $0x58] sm:$0xff]
        %v778 = vld [vmem:[%s533 + $0x60] sm:$0xff]
        %v779 = vld [vmem:[%s533 + $0x68] sm:$0xff]
        %v780 = vld [vmem:[%s533 + $0x70] sm:$0xff]
        %v781 = vld [vmem:[%s533 + $0x78] sm:$0xff]
        %v782 = vld [vmem:[%s634] sm:$0x1]
        %v784 = vlaneseq
        %v785 = vshrl.u32 %v784, 7
        %v786 = vsub.s32 0, %v785
        %v787 = vrot.slane %v782, %v786
        %789 = vmatprep.subr.mxu0 0.0
        %790 = vmatpush1.msra.mxu0 %v766
        %791 = vmatprep.subr.mxu0 0.0
        %792 = vmatpush1.msra.mxu0 %v767
        %793 = vmatprep.subr.mxu0 0.0
        %794 = vmatpush1.msra.mxu0 %v768
        %795 = vmatprep.subr.mxu0 0.0
        %796 = vmatpush1.msra.mxu0 %v769
        %797 = vmatprep.subr.mxu0 0.0
        %798 = vmatpush1.msra.mxu0 %v770
        %799 = vmatprep.subr.mxu0 0.0
        %800 = vmatpush1.msra.mxu0 %v771
        %801 = vmatprep.subr.mxu0 0.0
        %802 = vmatpush1.msra.mxu0 %v772
        %803 = vmatprep.subr.mxu0 0.0
        %804 = vmatpush1.msra.mxu0 %v773
        %805 = vmatprep.subr.mxu0 0.0
        %806 = vmatpush1.msra.mxu0 %v774
        %807 = vmatprep.subr.mxu0 0.0
        %808 = vmatpush1.msra.mxu0 %v775
        %809 = vmatprep.subr.mxu0 0.0
        %810 = vmatpush1.msra.mxu0 %v776
        %811 = vmatprep.subr.mxu0 0.0
        %812 = vmatpush1.msra.mxu0 %v777
        %813 = vmatprep.subr.mxu0 0.0
        %814 = vmatpush1.msra.mxu0 %v778
        %815 = vmatprep.subr.mxu0 0.0
        %816 = vmatpush1.msra.mxu0 %v779
        %817 = vmatprep.subr.mxu0 0.0
        %818 = vmatpush1.msra.mxu0 %v780
        %819 = vmatprep.subr.mxu0 0.0
        %820 = vmatpush1.msra.mxu0 %v781
        %821 = vmatprep.subr.mxu0 0.0
        %822 = vmatpush1.msra.mxu0 0.0
        %823 = vmatprep.subr.mxu0 0.0
        %824 = vmatpush1.msra.mxu0 0.0
        %825 = vmatprep.subr.mxu0 0.0
        %826 = vmatpush1.msra.mxu0 0.0
        %827 = vmatprep.subr.mxu0 0.0
        %828 = vmatpush1.msra.mxu0 0.0
        %829 = vmatprep.subr.mxu0 0.0
        %830 = vmatpush1.msra.mxu0 0.0
        %831 = vmatprep.subr.mxu0 0.0
        %832 = vmatpush1.msra.mxu0 0.0
        %833 = vmatprep.subr.mxu0 0.0
        %834 = vmatpush1.msra.mxu0 0.0
        %835 = vmatprep.subr.mxu0 0.0
        %836 = vmatpush1.msra.mxu0 0.0
        %837 = vmatprep.subr.mxu0 0.0
        %838 = vmatpush1.msra.mxu0 0.0
        %839 = vmatprep.subr.mxu0 0.0
        %840 = vmatpush1.msra.mxu0 0.0
        %841 = vmatprep.subr.mxu0 0.0
        %842 = vmatpush1.msra.mxu0 0.0
        %843 = vmatprep.subr.mxu0 0.0
        %844 = vmatpush1.msra.mxu0 0.0
        %845 = vmatprep.subr.mxu0 0.0
        %846 = vmatpush1.msra.mxu0 0.0
        %847 = vmatprep.subr.mxu0 0.0
        %848 = vmatpush1.msra.mxu0 0.0
        %849 = vmatprep.subr.mxu0 0.0
        %850 = vmatpush1.msra.mxu0 0.0
        %851 = vmatprep.subr.mxu0 0.0
        %852 = vmatpush1.msra.mxu0 0.0
        %853 = vmatprep.mubr.f32.mxu0 0.0
        %854 = vmatmul.mubr.f32.gmra.mrb[0].mxu0 %v762
        %v855 = vpop.f32.mrb[0].mxu0
        %v856 = vadd.f32 %v787, %v855
        %v857 = vpop.f32.mrb[0].mxu0
        %858 = vmatprep.mubr.f32.mxu0 0.0
        %859 = vmatmul.mubr.f32.gmra.mrb[0].mxu0 %v763
        %v860 = vpop.f32.mrb[0].mxu0
        %v861 = vadd.f32 %v787, %v860
        %v862 = vpop.f32.mrb[0].mxu0
        %863 = vmatprep.mubr.f32.mxu0 0.0
        %864 = vmatmul.mubr.f32.gmra.mrb[0].mxu0 %v764
        %v865 = vpop.f32.mrb[0].mxu0
        %v866 = vadd.f32 %v787, %v865
        %v867 = vpop.f32.mrb[0].mxu0
        %868 = vmatprep.mubr.f32.mxu0 0.0
        %869 = vmatmul.mubr.f32.gmra.mrb[0].mxu0 %v765
        %v870 = vpop.f32.mrb[0].mxu0
        %v871 = vadd.f32 %v787, %v870
        %v872 = vpop.f32.mrb[0].mxu0
        %873 = vdwg.mxu0
        %v874 = vld [vmem:[%s1] sm:$0xff]
        %v875 = vld [vmem:[%s1 + $0x8] sm:$0xff]
        %v876 = vld [vmem:[%s1 + $0x10] sm:$0xff]
        %v877 = vld [vmem:[%s1 + $0x18] sm:$0xff]
        %v879 = vsel %vm664, %v874, 0
        %v882 = vsel %vm664, %v875, 0
        %v885 = vsel %vm664, %v876, 0
        %v888 = vsel %vm664, %v877, 0
        %890 = vmatprep.subr.mxu0 0.0
        %891 = vmatpush1.msra.mxu0 %v649
        %892 = vmatprep.subr.mxu0 0.0
        %893 = vmatpush1.msra.mxu0 %v650
        %894 = vmatprep.subr.mxu0 0.0
        %895 = vmatpush1.msra.mxu0 0.0
        %896 = vmatprep.subr.mxu0 0.0
        %897 = vmatpush1.msra.mxu0 0.0
        %898 = vmatprep.subr.mxu0 0.0
        %899 = vmatpush1.msra.mxu0 0.0
        %900 = vmatprep.subr.mxu0 0.0
        %901 = vmatpush1.msra.mxu0 0.0
        %902 = vmatprep.subr.mxu0 0.0
        %903 = vmatpush1.msra.mxu0 0.0
        %904 = vmatprep.subr.mxu0 0.0
        %905 = vmatpush1.msra.mxu0 0.0
        %906 = vmatprep.subr.mxu0 0.0
        %907 = vmatpush1.msra.mxu0 0.0
        %908 = vmatprep.subr.mxu0 0.0
        %909 = vmatpush1.msra.mxu0 0.0
        %910 = vmatprep.subr.mxu0 0.0
        %911 = vmatpush1.msra.mxu0 0.0
        %912 = vmatprep.subr.mxu0 0.0
        %913 = vmatpush1.msra.mxu0 0.0
        %914 = vmatprep.subr.mxu0 0.0
        %915 = vmatpush1.msra.mxu0 0.0
        %916 = vmatprep.subr.mxu0 0.0
        %917 = vmatpush1.msra.mxu0 0.0
        %918 = vmatprep.subr.mxu0 0.0
        %919 = vmatpush1.msra.mxu0 0.0
        %920 = vmatprep.subr.mxu0 0.0
        %921 = vmatpush1.msra.mxu0 0.0
        %922 = vmatprep.subr.mxu0 0.0
        %923 = vmatpush1.msra.mxu0 0.0
        %924 = vmatprep.subr.mxu0 0.0
        %925 = vmatpush1.msra.mxu0 0.0
        %926 = vmatprep.subr.mxu0 0.0
        %927 = vmatpush1.msra.mxu0 0.0
        %928 = vmatprep.subr.mxu0 0.0
        %929 = vmatpush1.msra.mxu0 0.0
        %930 = vmatprep.subr.mxu0 0.0
        %931 = vmatpush1.msra.mxu0 0.0
        %932 = vmatprep.subr.mxu0 0.0
        %933 = vmatpush1.msra.mxu0 0.0
        %934 = vmatprep.subr.mxu0 0.0
        %935 = vmatpush1.msra.mxu0 0.0
        %936 = vmatprep.subr.mxu0 0.0
        %937 = vmatpush1.msra.mxu0 0.0
        %938 = vmatprep.subr.mxu0 0.0
        %939 = vmatpush1.msra.mxu0 0.0
        %940 = vmatprep.subr.mxu0 0.0
        %941 = vmatpush1.msra.mxu0 0.0
        %942 = vmatprep.subr.mxu0 0.0
        %943 = vmatpush1.msra.mxu0 0.0
        %944 = vmatprep.subr.mxu0 0.0
        %945 = vmatpush1.msra.mxu0 0.0
        %946 = vmatprep.subr.mxu0 0.0
        %947 = vmatpush1.msra.mxu0 0.0
        %948 = vmatprep.subr.mxu0 0.0
        %949 = vmatpush1.msra.mxu0 0.0
        %950 = vmatprep.subr.mxu0 0.0
        %951 = vmatpush1.msra.mxu0 0.0
        %952 = vmatprep.subr.mxu0 0.0
        %953 = vmatpush1.msra.mxu0 0.0
        %954 = vmatprep.mubr.f32.mxu0 0.0
        %955 = vmatmul.mubr.f32.gmra.mrb[0].mxu0 %v879
        %v956 = vpop.f32.mrb[0].mxu0
        %v957 = vadd.f32 %v856, %v956
        %v958 = vpop.f32.mrb[0].mxu0
        %959 = vmatprep.mubr.f32.mxu0 0.0
        %960 = vmatmul.mubr.f32.gmra.mrb[0].mxu0 %v882
        %v961 = vpop.f32.mrb[0].mxu0
        %v962 = vadd.f32 %v861, %v961
        %v963 = vpop.f32.mrb[0].mxu0
        %964 = vmatprep.mubr.f32.mxu0 0.0
        %965 = vmatmul.mubr.f32.gmra.mrb[0].mxu0 %v885
        %v966 = vpop.f32.mrb[0].mxu0
        %v967 = vadd.f32 %v866, %v966
        %v968 = vpop.f32.mrb[0].mxu0
        %969 = vmatprep.mubr.f32.mxu0 0.0
        %970 = vmatmul.mubr.f32.gmra.mrb[0].mxu0 %v888
        %v971 = vpop.f32.mrb[0].mxu0
        %v972 = vadd.f32 %v871, %v971
        %v973 = vpop.f32.mrb[0].mxu0
        %974 = vdwg.mxu0
        %v975 = vmax.f32 %v957, 0.0
        %v976 = vmax.f32 %v962, 0.0
        %v977 = vmax.f32 %v967, 0.0
        %v978 = vmax.f32 %v972, 0.0
        %v979 = vld [vmem:[%s2] sm:$0xff]
        %v980 = vld [vmem:[%s2 + $0x8] sm:$0xff]
        %vm981 = vcmask 261120
        %v983 = vsel %vm981, %v979, 0
        %v986 = vsel %vm981, %v980, 0
        %988 = vmatprep.subr.mxu0 0.0
        %989 = vmatpush1.msra.mxu0 %v975
        %990 = vmatprep.subr.mxu0 0.0
        %991 = vmatpush1.msra.mxu0 %v976
        %992 = vmatprep.subr.mxu0 0.0
        %993 = vmatpush1.msra.mxu0 %v977
        %994 = vmatprep.subr.mxu0 0.0
        %995 = vmatpush1.msra.mxu0 %v978
        %996 = vmatprep.subr.mxu0 0.0
        %997 = vmatpush1.msra.mxu0 0.0
        %998 = vmatprep.subr.mxu0 0.0
        %999 = vmatpush1.msra.mxu0 0.0
        %1000 = vmatprep.subr.mxu0 0.0
        %1001 = vmatpush1.msra.mxu0 0.0
        %1002 = vmatprep.subr.mxu0 0.0
        %1003 = vmatpush1.msra.mxu0 0.0
        %1004 = vmatprep.subr.mxu0 0.0
        %1005 = vmatpush1.msra.mxu0 0.0
        %1006 = vmatprep.subr.mxu0 0.0
        %1007 = vmatpush1.msra.mxu0 0.0
        %1008 = vmatprep.subr.mxu0 0.0
        %1009 = vmatpush1.msra.mxu0 0.0
        %1010 = vmatprep.subr.mxu0 0.0
        %1011 = vmatpush1.msra.mxu0 0.0
        %1012 = vmatprep.subr.mxu0 0.0
        %1013 = vmatpush1.msra.mxu0 0.0
        %1014 = vmatprep.subr.mxu0 0.0
        %1015 = vmatpush1.msra.mxu0 0.0
        %1016 = vmatprep.subr.mxu0 0.0
        %1017 = vmatpush1.msra.mxu0 0.0
        %1018 = vmatprep.subr.mxu0 0.0
        %1019 = vmatpush1.msra.mxu0 0.0
        %1020 = vmatprep.subr.mxu0 0.0
        %1021 = vmatpush1.msra.mxu0 0.0
        %1022 = vmatprep.subr.mxu0 0.0
        %1023 = vmatpush1.msra.mxu0 0.0
        %1024 = vmatprep.subr.mxu0 0.0
        %1025 = vmatpush1.msra.mxu0 0.0
        %1026 = vmatprep.subr.mxu0 0.0
        %1027 = vmatpush1.msra.mxu0 0.0
        %1028 = vmatprep.subr.mxu0 0.0
        %1029 = vmatpush1.msra.mxu0 0.0
        %1030 = vmatprep.subr.mxu0 0.0
        %1031 = vmatpush1.msra.mxu0 0.0
        %1032 = vmatprep.subr.mxu0 0.0
        %1033 = vmatpush1.msra.mxu0 0.0
        %1034 = vmatprep.subr.mxu0 0.0
        %1035 = vmatpush1.msra.mxu0 0.0
        %1036 = vmatprep.subr.mxu0 0.0
        %1037 = vmatpush1.msra.mxu0 0.0
        %1038 = vmatprep.subr.mxu0 0.0
        %1039 = vmatpush1.msra.mxu0 0.0
        %1040 = vmatprep.subr.mxu0 0.0
        %1041 = vmatpush1.msra.mxu0 0.0
        %1042 = vmatprep.subr.mxu0 0.0
        %1043 = vmatpush1.msra.mxu0 0.0
        %1044 = vmatprep.subr.mxu0 0.0
        %1045 = vmatpush1.msra.mxu0 0.0
        %1046 = vmatprep.subr.mxu0 0.0
        %1047 = vmatpush1.msra.mxu0 0.0
        %1048 = vmatprep.subr.mxu0 0.0
        %1049 = vmatpush1.msra.mxu0 0.0
        %1050 = vmatprep.subr.mxu0 0.0
        %1051 = vmatpush1.msra.mxu0 0.0
        %1052 = vmatprep.mubr.f32.mxu0 0.0
        %1053 = vmatmul.mubr.f32.gmra.mrb[0].mxu0 %v983
        %v1054 = vpop.f32.mrb[0].mxu0
        %v1055 = vadd.f32 0.0, %v1054
        %v1056 = vpop.f32.mrb[0].mxu0
        %1057 = vmatprep.mubr.f32.mxu0 0.0
        %1058 = vmatmul.mubr.f32.gmra.mrb[0].mxu0 %v986
        %v1059 = vpop.f32.mrb[0].mxu0
        %v1060 = vadd.f32 0.0, %v1059
        %v1061 = vpop.f32.mrb[0].mxu0
        %1062 = vdwg.mxu0
        %v1063 = vld [vmem:[%s623] sm:$0x1]
        %v1064 = vadd.f32 %v1063, 1.0
        %v1066 = vlaneseq
        %v1067 = vshrl.u32 %v1066, 7
        %v1068 = vsub.s32 0, %v1067
        %v1069 = vrot.slane %v1064, %v1068
        %v1071 = vmul.f32 %v1069, %v649
        %v1072 = vmul.f32 %v1069, %v650
        %v1073 = vadd.f32 %v1071, %v1055
        %v1074 = vadd.f32 %v1072, %v1060
        %v1075 = vld [vmem:[%s542] sm:$0xff]
        %v1076 = vld [vmem:[%s542 + $0x8] sm:$0xff]
        %v1077 = vld [vmem:[%s542 + $0x10] sm:$0xff]
        %v1078 = vld [vmem:[%s542 + $0x18] sm:$0xff]
        %v1079 = vld [vmem:[%s542 + $0x20] sm:$0xff]
        %v1080 = vld [vmem:[%s542 + $0x28] sm:$0xff]
        %v1081 = vld [vmem:[%s542 + $0x30] sm:$0xff]
        %v1082 = vld [vmem:[%s542 + $0x38] sm:$0xff]
        %v1083 = vld [vmem:[%s542 + $0x40] sm:$0xff]
        %v1084 = vld [vmem:[%s542 + $0x48] sm:$0xff]
        %v1085 = vld [vmem:[%s542 + $0x50] sm:$0xff]
        %v1086 = vld [vmem:[%s542 + $0x58] sm:$0xff]
        %v1087 = vld [vmem:[%s542 + $0x60] sm:$0xff]
        %v1088 = vld [vmem:[%s542 + $0x68] sm:$0xff]
        %v1089 = vld [vmem:[%s542 + $0x70] sm:$0xff]
        %v1090 = vld [vmem:[%s542 + $0x78] sm:$0xff]
        %v1091 = vld [vmem:[%s637] sm:$0x1]
        %v1093 = vlaneseq
        %v1094 = vshrl.u32 %v1093, 7
        %v1095 = vsub.s32 0, %v1094
        %v1096 = vrot.slane %v1091, %v1095
        %1098 = vmatprep.subr.mxu0 0.0
        %1099 = vmatpush1.msra.mxu0 %v1075
        %1100 = vmatprep.subr.mxu0 0.0
        %1101 = vmatpush1.msra.mxu0 %v1076
        %1102 = vmatprep.subr.mxu0 0.0
        %1103 = vmatpush1.msra.mxu0 %v1077
        %1104 = vmatprep.subr.mxu0 0.0
        %1105 = vmatpush1.msra.mxu0 %v1078
        %1106 = vmatprep.subr.mxu0 0.0
        %1107 = vmatpush1.msra.mxu0 %v1079
        %1108 = vmatprep.subr.mxu0 0.0
        %1109 = vmatpush1.msra.mxu0 %v1080
        %1110 = vmatprep.subr.mxu0 0.0
        %1111 = vmatpush1.msra.mxu0 %v1081
        %1112 = vmatprep.subr.mxu0 0.0
        %1113 = vmatpush1.msra.mxu0 %v1082
        %1114 = vmatprep.subr.mxu0 0.0
        %1115 = vmatpush1.msra.mxu0 %v1083
        %1116 = vmatprep.subr.mxu0 0.0
        %1117 = vmatpush1.msra.mxu0 %v1084
        %1118 = vmatprep.subr.mxu0 0.0
        %1119 = vmatpush1.msra.mxu0 %v1085
        %1120 = vmatprep.subr.mxu0 0.0
        %1121 = vmatpush1.msra.mxu0 %v1086
        %1122 = vmatprep.subr.mxu0 0.0
        %1123 = vmatpush1.msra.mxu0 %v1087
        %1124 = vmatprep.subr.mxu0 0.0
        %1125 = vmatpush1.msra.mxu0 %v1088
        %1126 = vmatprep.subr.mxu0 0.0
        %1127 = vmatpush1.msra.mxu0 %v1089
        %1128 = vmatprep.subr.mxu0 0.0
        %1129 = vmatpush1.msra.mxu0 %v1090
        %1130 = vmatprep.subr.mxu0 0.0
        %1131 = vmatpush1.msra.mxu0 0.0
        %1132 = vmatprep.subr.mxu0 0.0
        %1133 = vmatpush1.msra.mxu0 0.0
        %1134 = vmatprep.subr.mxu0 0.0
        %1135 = vmatpush1.msra.mxu0 0.0
        %1136 = vmatprep.subr.mxu0 0.0
        %1137 = vmatpush1.msra.mxu0 0.0
        %1138 = vmatprep.subr.mxu0 0.0
        %1139 = vmatpush1.msra.mxu0 0.0
        %1140 = vmatprep.subr.mxu0 0.0
        %1141 = vmatpush1.msra.mxu0 0.0
        %1142 = vmatprep.subr.mxu0 0.0
        %1143 = vmatpush1.msra.mxu0 0.0
        %1144 = vmatprep.subr.mxu0 0.0
        %1145 = vmatpush1.msra.mxu0 0.0
        %1146 = vmatprep.subr.mxu0 0.0
        %1147 = vmatpush1.msra.mxu0 0.0
        %1148 = vmatprep.subr.mxu0 0.0
        %1149 = vmatpush1.msra.mxu0 0.0
        %1150 = vmatprep.subr.mxu0 0.0
        %1151 = vmatpush1.msra.mxu0 0.0
        %1152 = vmatprep.subr.mxu0 0.0
        %1153 = vmatpush1.msra.mxu0 0.0
        %1154 = vmatprep.subr.mxu0 0.0
        %1155 = vmatpush1.msra.mxu0 0.0
        %1156 = vmatprep.subr.mxu0 0.0
        %1157 = vmatpush1.msra.mxu0 0.0
        %1158 = vmatprep.subr.mxu0 0.0
        %1159 = vmatpush1.msra.mxu0 0.0
        %1160 = vmatprep.subr.mxu0 0.0
        %1161 = vmatpush1.msra.mxu0 0.0
        %1162 = vmatprep.mubr.f32.mxu0 0.0
        %1163 = vmatmul.mubr.f32.gmra.mrb[0].mxu0 %v1073
        %v1164 = vpop.f32.mrb[0].mxu0
        %v1165 = vadd.f32 %v1096, %v1164
        %v1166 = vpop.f32.mrb[0].mxu0
        %1167 = vmatprep.mubr.f32.mxu0 0.0
        %1168 = vmatmul.mubr.f32.gmra.mrb[0].mxu0 %v1074
        %v1169 = vpop.f32.mrb[0].mxu0
        %v1170 = vadd.f32 %v1096, %v1169
        %v1171 = vpop.f32.mrb[0].mxu0
        %1172 = vdwg.mxu0
        %v1173 = vmax.f32 %v1165, 0.0
        %v1174 = vmax.f32 %v1170, 0.0
        %v1175 = vld [vmem:[%s551] sm:$0xff]
        %v1176 = vld [vmem:[%s551 + $0x8] sm:$0xff]
        %v1177 = vld [vmem:[%s551 + $0x10] sm:$0xff]
        %v1178 = vld [vmem:[%s551 + $0x18] sm:$0xff]
        %v1179 = vld [vmem:[%s551 + $0x20] sm:$0xff]
        %v1180 = vld [vmem:[%s551 + $0x28] sm:$0xff]
        %v1181 = vld [vmem:[%s551 + $0x30] sm:$0xff]
        %v1182 = vld [vmem:[%s551 + $0x38] sm:$0xff]
        %v1183 = vld [vmem:[%s551 + $0x40] sm:$0xff]
        %v1184 = vld [vmem:[%s551 + $0x48] sm:$0xff]
        %v1185 = vld [vmem:[%s551 + $0x50] sm:$0xff]
        %v1186 = vld [vmem:[%s551 + $0x58] sm:$0xff]
        %v1187 = vld [vmem:[%s551 + $0x60] sm:$0xff]
        %v1188 = vld [vmem:[%s551 + $0x68] sm:$0xff]
        %v1189 = vld [vmem:[%s551 + $0x70] sm:$0xff]
        %v1190 = vld [vmem:[%s551 + $0x78] sm:$0xff]
        %v1191 = vld [vmem:[%s640] sm:$0x1]
        %v1193 = vlaneseq
        %v1194 = vshrl.u32 %v1193, 7
        %v1195 = vsub.s32 0, %v1194
        %v1196 = vrot.slane %v1191, %v1195
        %1198 = vmatprep.subr.mxu0 0.0
        %1199 = vmatpush1.msra.mxu0 %v1175
        %1200 = vmatprep.subr.mxu0 0.0
        %1201 = vmatpush1.msra.mxu0 %v1176
        %1202 = vmatprep.subr.mxu0 0.0
        %1203 = vmatpush1.msra.mxu0 %v1177
        %1204 = vmatprep.subr.mxu0 0.0
        %1205 = vmatpush1.msra.mxu0 %v1178
        %1206 = vmatprep.subr.mxu0 0.0
        %1207 = vmatpush1.msra.mxu0 %v1179
        %1208 = vmatprep.subr.mxu0 0.0
        %1209 = vmatpush1.msra.mxu0 %v1180
        %1210 = vmatprep.subr.mxu0 0.0
        %1211 = vmatpush1.msra.mxu0 %v1181
        %1212 = vmatprep.subr.mxu0 0.0
        %1213 = vmatpush1.msra.mxu0 %v1182
        %1214 = vmatprep.subr.mxu0 0.0
        %1215 = vmatpush1.msra.mxu0 %v1183
        %1216 = vmatprep.subr.mxu0 0.0
        %1217 = vmatpush1.msra.mxu0 %v1184
        %1218 = vmatprep.subr.mxu0 0.0
        %1219 = vmatpush1.msra.mxu0 %v1185
        %1220 = vmatprep.subr.mxu0 0.0
        %1221 = vmatpush1.msra.mxu0 %v1186
        %1222 = vmatprep.subr.mxu0 0.0
        %1223 = vmatpush1.msra.mxu0 %v1187
        %1224 = vmatprep.subr.mxu0 0.0
        %1225 = vmatpush1.msra.mxu0 %v1188
        %1226 = vmatprep.subr.mxu0 0.0
        %1227 = vmatpush1.msra.mxu0 %v1189
        %1228 = vmatprep.subr.mxu0 0.0
        %1229 = vmatpush1.msra.mxu0 %v1190
        %1230 = vmatprep.subr.mxu0 0.0
        %1231 = vmatpush1.msra.mxu0 0.0
        %1232 = vmatprep.subr.mxu0 0.0
        %1233 = vmatpush1.msra.mxu0 0.0
        %1234 = vmatprep.subr.mxu0 0.0
        %1235 = vmatpush1.msra.mxu0 0.0
        %1236 = vmatprep.subr.mxu0 0.0
        %1237 = vmatpush1.msra.mxu0 0.0
        %1238 = vmatprep.subr.mxu0 0.0
        %1239 = vmatpush1.msra.mxu0 0.0
        %1240 = vmatprep.subr.mxu0 0.0
        %1241 = vmatpush1.msra.mxu0 0.0
        %1242 = vmatprep.subr.mxu0 0.0
        %1243 = vmatpush1.msra.mxu0 0.0
        %1244 = vmatprep.subr.mxu0 0.0
        %1245 = vmatpush1.msra.mxu0 0.0
        %1246 = vmatprep.subr.mxu0 0.0
        %1247 = vmatpush1.msra.mxu0 0.0
        %1248 = vmatprep.subr.mxu0 0.0
        %1249 = vmatpush1.msra.mxu0 0.0
        %1250 = vmatprep.subr.mxu0 0.0
        %1251 = vmatpush1.msra.mxu0 0.0
        %1252 = vmatprep.subr.mxu0 0.0
        %1253 = vmatpush1.msra.mxu0 0.0
        %1254 = vmatprep.subr.mxu0 0.0
        %1255 = vmatpush1.msra.mxu0 0.0
        %1256 = vmatprep.subr.mxu0 0.0
        %1257 = vmatpush1.msra.mxu0 0.0
        %1258 = vmatprep.subr.mxu0 0.0
        %1259 = vmatpush1.msra.mxu0 0.0
        %1260 = vmatprep.subr.mxu0 0.0
        %1261 = vmatpush1.msra.mxu0 0.0
        %1262 = vmatprep.mubr.f32.mxu0 0.0
        %1263 = vmatmul.mubr.f32.gmra.mrb[0].mxu0 %v1173
        %v1264 = vpop.f32.mrb[0].mxu0
        %v1265 = vadd.f32 %v1196, %v1264
        %v1266 = vpop.f32.mrb[0].mxu0
        %1267 = vmatprep.mubr.f32.mxu0 0.0
        %1268 = vmatmul.mubr.f32.gmra.mrb[0].mxu0 %v1174
        %v1269 = vpop.f32.mrb[0].mxu0
        %v1270 = vadd.f32 %v1196, %v1269
        %v1271 = vpop.f32.mrb[0].mxu0
        %1272 = vdwg.mxu0
        %v1273 = vmax.f32 %v1265, 0.0
        %v1274 = vmax.f32 %v1270, 0.0
        %v1275 = vld [vmem:[%s4] sm:$0xff]
        %v1276 = vld [vmem:[%s4 + $0x8] sm:$0xff]
        %1278 = vset.pattern.permute.xlu0 0
        %1279 = vperm.xlu0 %1278, %v1275
        %v1280 = vpop.permute.xlu0 %1279
        %1283 = vset.pattern.permute.xlu0 0
        %1284 = vperm.xlu0 %1283, %v1276
        %v1285 = vpop.permute.xlu0 %1284
        %v1287 = vmul.f32 %v1273, %v1280
        %v1288 = vmul.f32 %v1274, %v1285
        %1289 = vst [vmem:[#allocation8] sm:$0xff] %v1287
        %1290 = vst [vmem:[#allocation8 + $0x8] sm:$0xff] %v1288
        // Predicated region
        $region93: #{tpu_custom_call.1} parent=75 // pred_check
          %p1291 = pneg %p384
        $region94: #{tpu_custom_call.1} parent=75 // pred_check_branch
          %1293 = sbr.rel (%p1291) target = $region96
        $region95: #{tpu_custom_call.1} parent=75 // pred_region
          %s1295 = ssub.s32 256, 256
          %1296 = vsyncadd [#allocation4], %s1295
          %s1297 = sshll.u32 [#allocation8], 4
          %s1298 = int_to_ptr.vmem [resolvable:$true] %s1297
          %1303 = dma.vmem_to_hbm [thread:$0]  %s1298, 256, %s14, [#allocation4], 128, 128, 8
        $region96: #{tpu_custom_call.1} parent=75 // pred_fallthru
          _
        // Predicated region
        $region97: #{tpu_custom_call.1} parent=75 // pred_check
          %p1304 = pneg %p384
        $region98: #{tpu_custom_call.1} parent=75 // pred_check_branch
          %1306 = sbr.rel (%p1304) target = $region100
        $region99: #{tpu_custom_call.1} parent=75 // pred_region
          %1307 = dma.done [#allocation4], 256
        $region100: #{tpu_custom_call.1} parent=75 // pred_fallthru
          _
      $region76: #{tpu_custom_call.1} parent=5 // pred_fallthru
        _
      %p1308 = scmp.le.s32.totalorder 2, %s27
      // Predicated region
      $region101: #{tpu_custom_call.1} parent=5 // pred_check
        %p1309 = pneg %p1308
      $region102: #{tpu_custom_call.1} parent=5 // pred_check_branch
        %1311 = sbr.rel (%p1309) target = $region104
      $region103: #{tpu_custom_call.1} parent=5 // pred_region
        %s1312 = ssub.s32 %s27, 2
      $region104: #{tpu_custom_call.1} parent=5 // pred_fallthru
        _
    $region6: #{tpu_custom_call.1} parent=1 // loop_footer
      %s31 = sadd.s32 1, %s27
    $region7: #{tpu_custom_call.1} parent=1 // loop_footer_branch
      %26 = sbr.rel target = $region3
    $region8: #{tpu_custom_call.1} parent=1 // loop_exit
      _
    %1313 = vsyncpa [#allocation3], 1
    %s1314 = scalar_lea.sflag [#allocation3], 1
    %1315 = vsyncpa %s1314, 1
    %1316 = vsyncpa [#allocation6], 1
    %s1317 = scalar_lea.sflag [#allocation6], 1
    %1318 = vsyncpa %s1317, 1
    %1319 = vsyncpa [#allocation4], 1
    %s1320 = scalar_lea.sflag [#allocation4], 1
    %1321 = vsyncpa %s1320, 1

</llo_original>
